<compile_context>
chip_gen: v7x
topology: tpu7x:2x2x1
jax: 0.10.0
libtpu: 0.0.40
codegen_flags: <defaults>
</compile_context>

<pallas_src>
import math
import functools

import jax
import jax.numpy as jnp
from jax.experimental import pallas as pl
from jax.experimental.pallas import tpu as pltpu


def _mha_kernel(q_ref, k_ref, v_ref, mask_ref,
                wq_ref, bq_ref, wk_ref, bk_ref,
                wv_ref, bv_ref, wd_ref, bd_ref,
                out_ref, *, d_k, batch_block, seq_len, d_model):
    Bt, S, D = batch_block, seq_len, d_model
    M = Bt * S
    h = pl.program_id(1)
    scale = 1.0 / math.sqrt(d_k)

    # Flatten (Bt, S) -> M rows: each projection is a single tall MXU matmul.
    xq = q_ref[...].reshape(M, D).astype(jnp.bfloat16)
    xk = k_ref[...].reshape(M, D).astype(jnp.bfloat16)
    xv = v_ref[...].reshape(M, D).astype(jnp.bfloat16)

    # Per-head projections. Weights arrive pre-transposed and head-sliced by
    # the BlockSpec (no in-kernel transpose / lane slicing). bf16 operands,
    # f32 accumulation on the MXU, bias added in f32.
    q = jnp.dot(xq, wq_ref[0], preferred_element_type=jnp.float32) + bq_ref[0]
    k = jnp.dot(xk, wk_ref[0], preferred_element_type=jnp.float32) + bk_ref[0]
    v = jnp.dot(xv, wv_ref[0], preferred_element_type=jnp.float32) + bv_ref[0]

    # Fold 1/sqrt(d_k) into q once instead of scaling the (S, S) scores.
    q = q * scale

    q3 = q.reshape(Bt, S, d_k).astype(jnp.bfloat16)
    k3 = k.reshape(Bt, S, d_k).astype(jnp.bfloat16)
    v3 = v.reshape(Bt, S, d_k).astype(jnp.bfloat16)

    # Scaled dot-product attention for this head, batched over Bt with a
    # single leading-batch-dim contraction.
    scores = jnp.einsum('bqd,bkd->bqk', q3, k3,
                        preferred_element_type=jnp.float32)      # (Bt, S, S)
    scores = scores + mask_ref[...] * (-1e9)

    # Softmax over keys; the divide goes to the EUP via pl.reciprocal.
    m = jnp.max(scores, axis=-1, keepdims=True)
    e = jnp.exp(scores - m)
    p = e * pl.reciprocal(jnp.sum(e, axis=-1, keepdims=True), approx=True)

    ctx = jnp.einsum('bqk,bkd->bqd', p.astype(jnp.bfloat16), v3,
                     preferred_element_type=jnp.float32)         # (Bt, S, d_k)

    # This head's contribution to the dense output projection; the full dense
    # result is accumulated over the head grid axis in the resident output
    # block (no head concatenate).
    y = jnp.dot(ctx.reshape(M, d_k).astype(jnp.bfloat16), wd_ref[0],
                preferred_element_type=jnp.float32)              # (M, D)

    @pl.when(h == 0)
    def _init():
        out_ref[...] = (y + bd_ref[...]).reshape(Bt, S, D)

    @pl.when(h > 0)
    def _accumulate():
        out_ref[...] = out_ref[...] + y.reshape(Bt, S, D)


def _pick_batch_block(B, S):
    """Batch rows per grid step: aim for Bt*S >= 256 (MXU M fill) while keeping
    >= 2 steps on the batch grid axis so both v7x TensorCores get work."""
    target = min(max(B // 2, 1), max(pl.cdiv(256, S), 1))
    bt = 1
    for cand in range(1, min(target, B) + 1):
        if B % cand == 0:
            bt = cand
    return bt


def multi_headed_attention(query, key, value, mask, params, *, num_heads,
                           batch_block=None):
    """query/key/value: (B, S, D) f32; mask: (B, S, S) f32; returns (B, S, D)."""
    B, S, D = query.shape
    assert D % num_heads == 0
    H = num_heads
    d_k = D // H

    wq, bq, wk, bk, wv, bv, wd, bd = params

    # Wrapper-side layout plumbing (one-time): pre-transpose nn.Linear weights
    # to (D_in, D_out), split heads onto a leading axis, cast weights to bf16.
    def qkv_weight(w):                       # (D, D) -> (H, D, d_k) bf16
        return jnp.transpose(w.T.reshape(D, H, d_k), (1, 0, 2)).astype(jnp.bfloat16)

    wq_h = qkv_weight(wq)
    wk_h = qkv_weight(wk)
    wv_h = qkv_weight(wv)
    bq_h = bq.reshape(H, 1, d_k).astype(jnp.float32)
    bk_h = bk.reshape(H, 1, d_k).astype(jnp.float32)
    bv_h = bv.reshape(H, 1, d_k).astype(jnp.float32)
    wd_h = wd.T.reshape(H, d_k, D).astype(jnp.bfloat16)   # (H, d_k, D)
    bd2 = bd.reshape(1, D).astype(jnp.float32)

    if batch_block is None:
        batch_block = _pick_batch_block(B, S)
    Bt = batch_block
    assert B % Bt == 0

    act_spec = pl.BlockSpec((Bt, S, D), lambda b, h: (b, 0, 0))
    mask_spec = pl.BlockSpec((Bt, S, S), lambda b, h: (b, 0, 0))
    wqkv_spec = pl.BlockSpec((1, D, d_k), lambda b, h: (h, 0, 0))
    bqkv_spec = pl.BlockSpec((1, 1, d_k), lambda b, h: (h, 0, 0))
    wd_spec = pl.BlockSpec((1, d_k, D), lambda b, h: (h, 0, 0))
    bd_spec = pl.BlockSpec((1, D), lambda b, h: (0, 0))
    out_spec = pl.BlockSpec((Bt, S, D), lambda b, h: (b, 0, 0))

    kernel = functools.partial(_mha_kernel, d_k=d_k, batch_block=Bt,
                               seq_len=S, d_model=D)

    return pl.pallas_call(
        kernel,
        out_shape=jax.ShapeDtypeStruct((B, S, D), jnp.float32),
        grid_spec=pltpu.PrefetchScalarGridSpec(
            num_scalar_prefetch=0,
            grid=(B // Bt, H),
            in_specs=[act_spec, act_spec, act_spec, mask_spec,
                      wqkv_spec, bqkv_spec, wqkv_spec, bqkv_spec,
                      wqkv_spec, bqkv_spec, wd_spec, bd_spec],
            out_specs=out_spec,
        ),
        compiler_params=pltpu.CompilerParams(
            dimension_semantics=("parallel", "arbitrary")),
    )(query, key, value, mask, wq_h, bq_h, wk_h, bk_h, wv_h, bv_h, wd_h, bd2)


def init_params(key, d_model):
    """Deterministic parameter init (nn.Linear-like uniform)."""
    ks = jax.random.split(key, 8)
    bound = 1.0 / math.sqrt(d_model)

    def u(k, shape):
        return jax.random.uniform(k, shape, jnp.float32, -bound, bound)

    wq = u(ks[0], (d_model, d_model)); bq = u(ks[1], (d_model,))
    wk = u(ks[2], (d_model, d_model)); bk = u(ks[3], (d_model,))
    wv = u(ks[4], (d_model, d_model)); bv = u(ks[5], (d_model,))
    wd = u(ks[6], (d_model, d_model)); bd = u(ks[7], (d_model,))
    return (wq, bq, wk, bk, wv, bv, wd, bd)


def reference_mha(query, key, value, mask, params, *, num_heads):
    """Pure-JAX f32 reference mirroring the PyTorch forward (eval mode)."""
    wq, bq, wk, bk, wv, bv, wd, bd = params
    B, S, D = query.shape
    d_k = D // num_heads

    def proj(x, w, b):
        return x @ w.T + b

    q = proj(query, wq, bq).reshape(B, S, num_heads, d_k).transpose(0, 2, 1, 3)
    k = proj(key, wk, bk).reshape(B, S, num_heads, d_k).transpose(0, 2, 1, 3)
    v = proj(value, wv, bv).reshape(B, S, num_heads, d_k).transpose(0, 2, 1, 3)

    scores = jnp.einsum('bhqd,bhkd->bhqk', q, k) / math.sqrt(d_k)
    scores = scores + mask[:, None, :, :] * (-1e9)
    p = jax.nn.softmax(scores, axis=-1)
    x = jnp.einsum('bhqk,bhkd->bhqd', p, v)
    x = x.transpose(0, 2, 1, 3).reshape(B, S, D)
    return x @ wd.T + bd


if __name__ == "__main__":
    # D = S = 128 keeps tiles (8,128)-aligned and the output lane-dense
    # (review feedback) while remaining small.
    B, S, D, H = 2, 128, 128, 4

    root = jax.random.PRNGKey(0)
    k_par, k_q, k_k, k_v, k_m = jax.random.split(root, 5)

    params = init_params(k_par, D)
    query = jax.random.normal(k_q, (B, S, D), jnp.float32)
    key_x = jax.random.normal(k_k, (B, S, D), jnp.float32)
    value = jax.random.normal(k_v, (B, S, D), jnp.float32)
    # binary mask: 1 => suppress that attention score
    mask = (jax.random.uniform(k_m, (B, S, S)) < 0.2).astype(jnp.float32)

    out = multi_headed_attention(query, key_x, value, mask, params, num_heads=H)
    out = jax.block_until_ready(out)

    ref = reference_mha(query, key_x, value, mask, params, num_heads=H)
    assert out.shape == (B, S, D)
    # bf16 MXU operands + approx reciprocal => loosened tolerance vs f32 ref.
    assert jnp.allclose(out, ref, atol=5e-2, rtol=5e-2), "mismatch vs reference"

    print("KERNEL_OK")
</pallas_src>

<mosaic_0001>
module attributes {stable_mosaic.version = 11 : i64} {
  func.func @_mha_kernel(%arg0: i32, %arg1: i32, %arg2: memref<1x128x128xf32, #tpu.memory_space<vmem>>, %arg3: memref<1x128x128xf32, #tpu.memory_space<vmem>>, %arg4: memref<1x128x128xf32, #tpu.memory_space<vmem>>, %arg5: memref<1x128x128xf32, #tpu.memory_space<vmem>>, %arg6: memref<1x128x32xbf16, #tpu.memory_space<vmem>>, %arg7: memref<1x1x32xf32, #tpu.memory_space<vmem>>, %arg8: memref<1x128x32xbf16, #tpu.memory_space<vmem>>, %arg9: memref<1x1x32xf32, #tpu.memory_space<vmem>>, %arg10: memref<1x128x32xbf16, #tpu.memory_space<vmem>>, %arg11: memref<1x1x32xf32, #tpu.memory_space<vmem>>, %arg12: memref<1x32x128xbf16, #tpu.memory_space<vmem>>, %arg13: memref<1x128xf32, #tpu.memory_space<vmem>>, %arg14: memref<1x128x128xf32, #tpu.memory_space<vmem>>) attributes {dimension_semantics = [#tpu.dimension_semantics<parallel>, #tpu.dimension_semantics<arbitrary>], iteration_bounds = array<i64: 2, 4>, scalar_prefetch = 0 : i64, scratch_operands = 0 : i64, tpu.core_type = #tpu.core_type<tc>, window_params = [{transform_indices = @transform_0, window_bounds = array<i64: 1, 128, 128>}, {transform_indices = @transform_1, window_bounds = array<i64: 1, 128, 128>}, {transform_indices = @transform_2, window_bounds = array<i64: 1, 128, 128>}, {transform_indices = @transform_3, window_bounds = array<i64: 1, 128, 128>}, {transform_indices = @transform_4, window_bounds = array<i64: 1, 128, 32>}, {transform_indices = @transform_5, window_bounds = array<i64: 1, 1, 32>}, {transform_indices = @transform_6, window_bounds = array<i64: 1, 128, 32>}, {transform_indices = @transform_7, window_bounds = array<i64: 1, 1, 32>}, {transform_indices = @transform_8, window_bounds = array<i64: 1, 128, 32>}, {transform_indices = @transform_9, window_bounds = array<i64: 1, 1, 32>}, {transform_indices = @transform_10, window_bounds = array<i64: 1, 32, 128>}, {pipeline_mode = #tpu.pipeline_mode<synchronous>, transform_indices = @transform_11, window_bounds = array<i64: 1, 128>}, {transform_indices = @transform_12, window_bounds = array<i64: 1, 128, 128>}]} {
    %c0 = arith.constant 0 : index
    %c0_0 = arith.constant 0 : index
    %c0_1 = arith.constant 0 : index
    %0 = vector.load %arg2[%c0, %c0_0, %c0_1] : memref<1x128x128xf32, #tpu.memory_space<vmem>>, vector<1x128x128xf32>
    %1 = vector.shape_cast %0 : vector<1x128x128xf32> to vector<128x128xf32>
    %2 = arith.truncf %1 : vector<128x128xf32> to vector<128x128xbf16>
    %c0_2 = arith.constant 0 : index
    %c0_3 = arith.constant 0 : index
    %c0_4 = arith.constant 0 : index
    %3 = vector.load %arg3[%c0_2, %c0_3, %c0_4] : memref<1x128x128xf32, #tpu.memory_space<vmem>>, vector<1x128x128xf32>
    %4 = vector.shape_cast %3 : vector<1x128x128xf32> to vector<128x128xf32>
    %5 = arith.truncf %4 : vector<128x128xf32> to vector<128x128xbf16>
    %c0_5 = arith.constant 0 : index
    %c0_6 = arith.constant 0 : index
    %c0_7 = arith.constant 0 : index
    %6 = vector.load %arg4[%c0_5, %c0_6, %c0_7] : memref<1x128x128xf32, #tpu.memory_space<vmem>>, vector<1x128x128xf32>
    %7 = vector.shape_cast %6 : vector<1x128x128xf32> to vector<128x128xf32>
    %8 = arith.truncf %7 : vector<128x128xf32> to vector<128x128xbf16>
    %c0_8 = arith.constant 0 : index
    %c0_9 = arith.constant 0 : index
    %c0_10 = arith.constant 0 : index
    %9 = vector.load %arg6[%c0_8, %c0_9, %c0_10] : memref<1x128x32xbf16, #tpu.memory_space<vmem>>, vector<1x128x32xbf16>
    %10 = vector.shape_cast %9 : vector<1x128x32xbf16> to vector<128x32xbf16>
    %cst = arith.constant dense<0.000000e+00> : vector<128x32xf32>
    %11 = tpu.matmul %2, %10, %cst {dimension_numbers = #tpu.dot_dimension_numbers<[1], [0], [0], [1], [0, 0, 1, 1], [], []>} : vector<128x128xbf16>, vector<128x32xbf16>, vector<128x32xf32> -> vector<128x32xf32>
    %c0_11 = arith.constant 0 : index
    %c0_12 = arith.constant 0 : index
    %c0_13 = arith.constant 0 : index
    %12 = vector.load %arg7[%c0_11, %c0_12, %c0_13] : memref<1x1x32xf32, #tpu.memory_space<vmem>>, vector<1x1x32xf32>
    %13 = vector.shape_cast %12 : vector<1x1x32xf32> to vector<1x32xf32>
    %14 = vector.broadcast %13 : vector<1x32xf32> to vector<128x32xf32>
    %15 = arith.addf %11, %14 : vector<128x32xf32>
    %c0_14 = arith.constant 0 : index
    %c0_15 = arith.constant 0 : index
    %c0_16 = arith.constant 0 : index
    %16 = vector.load %arg8[%c0_14, %c0_15, %c0_16] : memref<1x128x32xbf16, #tpu.memory_space<vmem>>, vector<1x128x32xbf16>
    %17 = vector.shape_cast %16 : vector<1x128x32xbf16> to vector<128x32xbf16>
    %cst_17 = arith.constant dense<0.000000e+00> : vector<128x32xf32>
    %18 = tpu.matmul %5, %17, %cst_17 {dimension_numbers = #tpu.dot_dimension_numbers<[1], [0], [0], [1], [0, 0, 1, 1], [], []>} : vector<128x128xbf16>, vector<128x32xbf16>, vector<128x32xf32> -> vector<128x32xf32>
    %c0_18 = arith.constant 0 : index
    %c0_19 = arith.constant 0 : index
    %c0_20 = arith.constant 0 : index
    %19 = vector.load %arg9[%c0_18, %c0_19, %c0_20] : memref<1x1x32xf32, #tpu.memory_space<vmem>>, vector<1x1x32xf32>
    %20 = vector.shape_cast %19 : vector<1x1x32xf32> to vector<1x32xf32>
    %21 = vector.broadcast %20 : vector<1x32xf32> to vector<128x32xf32>
    %22 = arith.addf %18, %21 : vector<128x32xf32>
    %c0_21 = arith.constant 0 : index
    %c0_22 = arith.constant 0 : index
    %c0_23 = arith.constant 0 : index
    %23 = vector.load %arg10[%c0_21, %c0_22, %c0_23] : memref<1x128x32xbf16, #tpu.memory_space<vmem>>, vector<1x128x32xbf16>
    %24 = vector.shape_cast %23 : vector<1x128x32xbf16> to vector<128x32xbf16>
    %cst_24 = arith.constant dense<0.000000e+00> : vector<128x32xf32>
    %25 = tpu.matmul %8, %24, %cst_24 {dimension_numbers = #tpu.dot_dimension_numbers<[1], [0], [0], [1], [0, 0, 1, 1], [], []>} : vector<128x128xbf16>, vector<128x32xbf16>, vector<128x32xf32> -> vector<128x32xf32>
    %c0_25 = arith.constant 0 : index
    %c0_26 = arith.constant 0 : index
    %c0_27 = arith.constant 0 : index
    %26 = vector.load %arg11[%c0_25, %c0_26, %c0_27] : memref<1x1x32xf32, #tpu.memory_space<vmem>>, vector<1x1x32xf32>
    %27 = vector.shape_cast %26 : vector<1x1x32xf32> to vector<1x32xf32>
    %28 = vector.broadcast %27 : vector<1x32xf32> to vector<128x32xf32>
    %29 = arith.addf %25, %28 : vector<128x32xf32>
    %cst_28 = arith.constant 0.176776692 : f32
    %30 = vector.broadcast %cst_28 : f32 to vector<128x32xf32>
    %31 = arith.mulf %15, %30 : vector<128x32xf32>
    %32 = vector.shape_cast %31 : vector<128x32xf32> to vector<1x128x32xf32>
    %33 = arith.truncf %32 : vector<1x128x32xf32> to vector<1x128x32xbf16>
    %34 = vector.shape_cast %22 : vector<128x32xf32> to vector<1x128x32xf32>
    %35 = arith.truncf %34 : vector<1x128x32xf32> to vector<1x128x32xbf16>
    %36 = vector.shape_cast %29 : vector<128x32xf32> to vector<1x128x32xf32>
    %37 = arith.truncf %36 : vector<1x128x32xf32> to vector<1x128x32xbf16>
    "tpu.trace_start"() <{level = 10 : i32, message = "bqd,bkd->bqk"}> : () -> ()
    %cst_29 = arith.constant dense<0.000000e+00> : vector<1x128x128xf32>
    %38 = tpu.matmul %33, %35, %cst_29 {dimension_numbers = #tpu.dot_dimension_numbers<[2], [2], [1], [1], [0, 0, 0, 1, 1, 1], [0], [0]>} : vector<1x128x32xbf16>, vector<1x128x32xbf16>, vector<1x128x128xf32> -> vector<1x128x128xf32>
    "tpu.trace_stop"() : () -> ()
    %c0_30 = arith.constant 0 : index
    %c0_31 = arith.constant 0 : index
    %c0_32 = arith.constant 0 : index
    %39 = vector.load %arg5[%c0_30, %c0_31, %c0_32] : memref<1x128x128xf32, #tpu.memory_space<vmem>>, vector<1x128x128xf32>
    %cst_33 = arith.constant -1.000000e+09 : f32
    %40 = vector.broadcast %cst_33 : f32 to vector<1x128x128xf32>
    %41 = arith.mulf %39, %40 : vector<1x128x128xf32>
    %42 = arith.addf %38, %41 : vector<1x128x128xf32>
    %cst_34 = arith.constant dense<0xFF800000> : vector<1x128xf32>
    %43 = vector.multi_reduction <maximumf>, %42, %cst_34 [2] : vector<1x128x128xf32> to vector<1x128xf32>
    %44 = vector.shape_cast %43 : vector<1x128xf32> to vector<1x128x1xf32>
    %45 = vector.broadcast %44 : vector<1x128x1xf32> to vector<1x128x128xf32>
    %46 = arith.subf %42, %45 : vector<1x128x128xf32>
    %47 = math.exp %46 : vector<1x128x128xf32>
    %cst_35 = arith.constant dense<0.000000e+00> : vector<1x128xf32>
    %48 = vector.multi_reduction <add>, %47, %cst_35 [2] : vector<1x128x128xf32> to vector<1x128xf32>
    %49 = vector.shape_cast %48 : vector<1x128xf32> to vector<1x128x1xf32>
    %50 = tpu.reciprocal %49 {approx = true} : vector<1x128x1xf32> -> vector<1x128x1xf32>
    %51 = vector.broadcast %50 : vector<1x128x1xf32> to vector<1x128x128xf32>
    %52 = arith.mulf %47, %51 : vector<1x128x128xf32>
    %53 = arith.truncf %52 : vector<1x128x128xf32> to vector<1x128x128xbf16>
    "tpu.trace_start"() <{level = 10 : i32, message = "bqk,bkd->bqd"}> : () -> ()
    %cst_36 = arith.constant dense<0.000000e+00> : vector<1x128x32xf32>
    %54 = tpu.matmul %53, %37, %cst_36 {dimension_numbers = #tpu.dot_dimension_numbers<[2], [1], [1], [2], [0, 0, 0, 1, 1, 2], [0], [0]>} : vector<1x128x128xbf16>, vector<1x128x32xbf16>, vector<1x128x32xf32> -> vector<1x128x32xf32>
    "tpu.trace_stop"() : () -> ()
    %55 = vector.shape_cast %54 : vector<1x128x32xf32> to vector<128x32xf32>
    %56 = arith.truncf %55 : vector<128x32xf32> to vector<128x32xbf16>
    %c0_37 = arith.constant 0 : index
    %c0_38 = arith.constant 0 : index
    %c0_39 = arith.constant 0 : index
    %57 = vector.load %arg12[%c0_37, %c0_38, %c0_39] : memref<1x32x128xbf16, #tpu.memory_space<vmem>>, vector<1x32x128xbf16>
    %58 = vector.shape_cast %57 : vector<1x32x128xbf16> to vector<32x128xbf16>
    %cst_40 = arith.constant dense<0.000000e+00> : vector<128x128xf32>
    %59 = tpu.matmul %56, %58, %cst_40 {dimension_numbers = #tpu.dot_dimension_numbers<[1], [0], [0], [1], [0, 0, 1, 1], [], []>} : vector<128x32xbf16>, vector<32x128xbf16>, vector<128x128xf32> -> vector<128x128xf32>
    %c0_i32 = arith.constant 0 : i32
    %60 = arith.cmpi eq, %arg1, %c0_i32 : i32
    %61 = arith.extui %60 : i1 to i32
    %c0_i32_41 = arith.constant 0 : i32
    %62 = arith.cmpi ne, %61, %c0_i32_41 : i32
    scf.if %62 {
      %c0_44 = arith.constant 0 : index
      %c0_45 = arith.constant 0 : index
      %66 = vector.load %arg13[%c0_44, %c0_45] : memref<1x128xf32, #tpu.memory_space<vmem>>, vector<1x128xf32>
      %67 = vector.broadcast %66 : vector<1x128xf32> to vector<128x128xf32>
      %68 = arith.addf %59, %67 : vector<128x128xf32>
      %69 = vector.shape_cast %68 : vector<128x128xf32> to vector<1x128x128xf32>
      %c0_46 = arith.constant 0 : index
      %c0_47 = arith.constant 0 : index
      %c0_48 = arith.constant 0 : index
      %70 = vector.load %arg14[%c0_46, %c0_47, %c0_48] : memref<1x128x128xf32, #tpu.memory_space<vmem>>, vector<1x128x128xf32>
      tpu.vector_store %arg14[%c0_46, %c0_47, %c0_48], %69 {strides = array<i32>} : memref<1x128x128xf32, #tpu.memory_space<vmem>>, vector<1x128x128xf32>,
    } else {
    }
    %c0_i32_42 = arith.constant 0 : i32
    %63 = arith.cmpi sgt, %arg1, %c0_i32_42 : i32
    %64 = arith.extui %63 : i1 to i32
    %c0_i32_43 = arith.constant 0 : i32
    %65 = arith.cmpi ne, %64, %c0_i32_43 : i32
    scf.if %65 {
      %c0_44 = arith.constant 0 : index
      %c0_45 = arith.constant 0 : index
      %c0_46 = arith.constant 0 : index
      %66 = vector.load %arg14[%c0_44, %c0_45, %c0_46] : memref<1x128x128xf32, #tpu.memory_space<vmem>>, vector<1x128x128xf32>
      %67 = vector.shape_cast %59 : vector<128x128xf32> to vector<1x128x128xf32>
      %68 = arith.addf %66, %67 : vector<1x128x128xf32>
      %c0_47 = arith.constant 0 : index
      %c0_48 = arith.constant 0 : index
      %c0_49 = arith.constant 0 : index
      %69 = vector.load %arg14[%c0_47, %c0_48, %c0_49] : memref<1x128x128xf32, #tpu.memory_space<vmem>>, vector<1x128x128xf32>
      tpu.vector_store %arg14[%c0_47, %c0_48, %c0_49], %68 {strides = array<i32>} : memref<1x128x128xf32, #tpu.memory_space<vmem>>, vector<1x128x128xf32>,
    } else {
    }
    return
  }
  func.func @transform_0(%arg0: i32, %arg1: i32) -> (i32, i32, i32) {
    %c0_i32 = arith.constant 0 : i32
    %c0_i32_0 = arith.constant 0 : i32
    %c0_i32_1 = arith.constant 0 : i32
    return %arg0, %c0_i32, %c0_i32_0 : i32, i32, i32
  }
  func.func @transform_1(%arg0: i32, %arg1: i32) -> (i32, i32, i32) {
    %c0_i32 = arith.constant 0 : i32
    %c0_i32_0 = arith.constant 0 : i32
    %c0_i32_1 = arith.constant 0 : i32
    return %arg0, %c0_i32, %c0_i32_0 : i32, i32, i32
  }
  func.func @transform_2(%arg0: i32, %arg1: i32) -> (i32, i32, i32) {
    %c0_i32 = arith.constant 0 : i32
    %c0_i32_0 = arith.constant 0 : i32
    %c0_i32_1 = arith.constant 0 : i32
    return %arg0, %c0_i32, %c0_i32_0 : i32, i32, i32
  }
  func.func @transform_3(%arg0: i32, %arg1: i32) -> (i32, i32, i32) {
    %c0_i32 = arith.constant 0 : i32
    %c0_i32_0 = arith.constant 0 : i32
    %c0_i32_1 = arith.constant 0 : i32
    return %arg0, %c0_i32, %c0_i32_0 : i32, i32, i32
  }
  func.func @transform_4(%arg0: i32, %arg1: i32) -> (i32, i32, i32) {
    %c0_i32 = arith.constant 0 : i32
    %c0_i32_0 = arith.constant 0 : i32
    %c0_i32_1 = arith.constant 0 : i32
    return %arg1, %c0_i32, %c0_i32_0 : i32, i32, i32
  }
  func.func @transform_5(%arg0: i32, %arg1: i32) -> (i32, i32, i32) {
    %c0_i32 = arith.constant 0 : i32
    %c0_i32_0 = arith.constant 0 : i32
    %c0_i32_1 = arith.constant 0 : i32
    return %arg1, %c0_i32, %c0_i32_0 : i32, i32, i32
  }
  func.func @transform_6(%arg0: i32, %arg1: i32) -> (i32, i32, i32) {
    %c0_i32 = arith.constant 0 : i32
    %c0_i32_0 = arith.constant 0 : i32
    %c0_i32_1 = arith.constant 0 : i32
    return %arg1, %c0_i32, %c0_i32_0 : i32, i32, i32
  }
  func.func @transform_7(%arg0: i32, %arg1: i32) -> (i32, i32, i32) {
    %c0_i32 = arith.constant 0 : i32
    %c0_i32_0 = arith.constant 0 : i32
    %c0_i32_1 = arith.constant 0 : i32
    return %arg1, %c0_i32, %c0_i32_0 : i32, i32, i32
  }
  func.func @transform_8(%arg0: i32, %arg1: i32) -> (i32, i32, i32) {
    %c0_i32 = arith.constant 0 : i32
    %c0_i32_0 = arith.constant 0 : i32
    %c0_i32_1 = arith.constant 0 : i32
    return %arg1, %c0_i32, %c0_i32_0 : i32, i32, i32
  }
  func.func @transform_9(%arg0: i32, %arg1: i32) -> (i32, i32, i32) {
    %c0_i32 = arith.constant 0 : i32
    %c0_i32_0 = arith.constant 0 : i32
    %c0_i32_1 = arith.constant 0 : i32
    return %arg1, %c0_i32, %c0_i32_0 : i32, i32, i32
  }
  func.func @transform_10(%arg0: i32, %arg1: i32) -> (i32, i32, i32) {
    %c0_i32 = arith.constant 0 : i32
    %c0_i32_0 = arith.constant 0 : i32
    %c0_i32_1 = arith.constant 0 : i32
    return %arg1, %c0_i32, %c0_i32_0 : i32, i32, i32
  }
  func.func @transform_11(%arg0: i32, %arg1: i32) -> (i32, i32) {
    %c0_i32 = arith.constant 0 : i32
    %c0_i32_0 = arith.constant 0 : i32
    %c0_i32_1 = arith.constant 0 : i32
    return %c0_i32, %c0_i32_0 : i32, i32
  }
  func.func @transform_12(%arg0: i32, %arg1: i32) -> (i32, i32, i32) {
    %c0_i32 = arith.constant 0 : i32
    %c0_i32_0 = arith.constant 0 : i32
    %c0_i32_1 = arith.constant 0 : i32
    return %arg0, %c0_i32, %c0_i32_0 : i32, i32, i32
  }
}

</mosaic_0001>

<llo_original>
// kernel: tpu_custom_call.1
$region0: #{tpu_custom_call.1}
  #allocation0 [shape = 'u32[]', space=smem, size = 0x4, offset = 0x4, fixed_abs, tag = 'smem constant byte address 0x4 - core index']
  #allocation1 [shape = 'u32[144,128]{1,0:T(1,128)}', space=vmem, size = 0x12000, scoped, tag = 'internal scratch']
  %s0 = inlined_call_operand.vmem [shape: f32[2,128,128], index: 0, kind: input, shape index: {}]
  %s1 = inlined_call_operand.vmem [shape: f32[2,128,128], index: 1, kind: input, shape index: {}]
  %s2 = inlined_call_operand.vmem [shape: f32[2,128,128], index: 2, kind: input, shape index: {}]
  %s3 = inlined_call_operand.hbm [shape: f32[2,128,128], index: 3, kind: input, shape index: {}]
  %s4 = inlined_call_operand.vmem [shape: bf16[4,128,32], index: 4, kind: input, shape index: {}]
  %s5 = inlined_call_operand.vmem [shape: f32[4,1,32], index: 5, kind: input, shape index: {}]
  %s6 = inlined_call_operand.vmem [shape: bf16[4,128,32], index: 6, kind: input, shape index: {}]
  %s7 = inlined_call_operand.vmem [shape: f32[4,1,32], index: 7, kind: input, shape index: {}]
  %s8 = inlined_call_operand.vmem [shape: bf16[4,128,32], index: 8, kind: input, shape index: {}]
  %s9 = inlined_call_operand.vmem [shape: f32[4,1,32], index: 9, kind: input, shape index: {}]
  %s10 = inlined_call_operand.vmem [shape: bf16[4,32,128], index: 10, kind: input, shape index: {}]
  %s11 = inlined_call_operand.vmem [shape: f32[1,128], index: 11, kind: input, shape index: {}]
  %s12 = inlined_call_operand.hbm [shape: f32[2,128,128], index: 12, kind: output, shape index: {}]
  %s13 = sld [smem:[#allocation0]]
  $region93: #{tpu_custom_call.1} parent=0
    _
  %s15 = ssub.s32 1, %s13
  %s16 = scalar_select 0, %s15, %s13
  $region1: #{tpu_custom_call.1} parent=0
    #allocation2 [shape = 'u8[131072]{0}', space=vmem, size = 0x20000, scoped, tag = 'input window, operand 3']
    #allocation3 [shape = 's32[2]{0}', space=sflag, size = 0x8, scoped, tag = 'scoped memory for tpu_custom_call.1']
    #allocation4 [shape = 's32[2]{0}', space=sflag, size = 0x8, scoped, tag = 'scoped memory for tpu_custom_call.1']
    #allocation5 [shape = 'u8[131072]{0}', space=vmem, size = 0x20000, scoped, tag = 'output window, operand 0']
    %17 = vsyncpa [#allocation3], 0
    %s18 = scalar_lea.sflag [#allocation3], 1
    %19 = vsyncpa %s18, 0
    %20 = vsyncpa [#allocation4], 0
    %s21 = scalar_lea.sflag [#allocation4], 1
    %22 = vsyncpa %s21, 0
    loop: start=0, step=1, limit=10
    $region2: #{tpu_custom_call.1} parent=1 // loop_pre_header
      _
    $region3: #{tpu_custom_call.1} parent=1 // loop_header
      %s24 = sphi 0, %s28
      %p25 = scmp.ge.s32.totalorder %s24, 10
      %s31 = sphi 0, %s43
      %s32 = sphi 0, %s39
      %s33 = sphi 0, %s31
      %s34 = sphi 0, %s32
      %s35 = sphi 0, %s33
      %s36 = sphi 0, %s34
      %s46 = sphi 0, %s48
      %s49 = sphi 0, %s46
      %s50 = sphi 0, %s49
      %s66 = sphi 0, %s50
      %s72 = sphi 0, %s74
      %s75 = sphi 0, %s72
      %s76 = sphi 0, %s75
      %s92 = sphi 0, %s76
      %s98 = sphi 0, %s100
      %s101 = sphi 0, %s98
      %s102 = sphi 0, %s101
      %s118 = sphi 0, %s102
      %s124 = sphi 0, %s126
      %s127 = sphi 0, %s124
      %s128 = sphi 0, %s127
      %s144 = sphi 0, %s128
      %s150 = sphi 0, %s152
      %s153 = sphi 0, %s150
      %s154 = sphi 0, %s153
      %s170 = sphi 0, %s154
      %s176 = sphi 0, %s178
      %s179 = sphi 0, %s176
      %s180 = sphi 0, %s179
      %s196 = sphi 0, %s180
      %s202 = sphi 0, %s204
      %s205 = sphi 0, %s202
      %s206 = sphi 0, %s205
      %s222 = sphi 0, %s206
      %s228 = sphi 0, %s230
      %s231 = sphi 0, %s228
      %s232 = sphi 0, %s231
      %s248 = sphi 0, %s232
      %s254 = sphi 0, %s256
      %s257 = sphi 0, %s254
      %s258 = sphi 0, %s257
      %s274 = sphi 0, %s258
      %s280 = sphi 0, %s282
      %s283 = sphi 0, %s280
      %s284 = sphi 0, %s283
      %s300 = sphi 0, %s284
      %s306 = sphi 0, %s308
      %s309 = sphi 0, %s306
      %s310 = sphi 0, %s309
      %s326 = sphi 0, %s310
      %s330 = sphi 0, %s330
      %s332 = sphi 0, %s330
      %s333 = sphi 0, %s332
      %s347 = sphi 0, %s333
      %s353 = sphi 0, %s355
      %s356 = sphi 0, %s353
      %s357 = sphi 0, %s356
      %s373 = sphi 0, %s357
    $region4: #{tpu_custom_call.1} parent=1 // loop_header_branch
      %27 = sbr.rel (%p25) target = $region8
    $region5: #{tpu_custom_call.1} parent=1 // loop_body
      %s29 = ssub.s32 %s24, 1
      %s30 = ssub.s32 %s24, 2
      %s37 = sadd.s32 1, %s32
      %p38 = scmp.ge.s32.totalorder %s37, 4
      %s39 = scalar_select %p38, 0, %s37
      %s40 = sadd.s32 1, %s31
      %s41 = scalar_select %p38, %s40, %s31
      %p42 = scmp.ge.s32.totalorder %s41, 2
      %s43 = scalar_select %p42, 0, %s41
      %s44 = ssub.s32 %s31, %s43
      %p45 = scmp.eq.s32.totalorder %s44, 0
      %s47 = sadd.s32 %s46, 1
      %s48 = scalar_select %p45, %s46, %s47
      %p51 = pneg %p45
      %p52 = scmp.eq.s32.totalorder %s24, 7
      %p53 = por %p51, %p52
      %p54 = scmp.ne.s32.totalorder %s46, %s49
      %p55 = scmp.eq.s32.totalorder %s24, 0
      %p56 = por %p54, %p55
      %p57 = scmp.ne.s32.totalorder %s46, %s49
      %p58 = scmp.eq.s32.totalorder %s29, 7
      %p59 = por %p57, %p58
      %p60 = scmp.ne.s32.totalorder %s49, %s50
      %p61 = scmp.eq.s32.totalorder %s29, 0
      %p62 = por %p60, %p61
      %p63 = scmp.ne.s32.totalorder %s49, %s50
      %p64 = scmp.eq.s32.totalorder %s30, 7
      %p65 = por %p63, %p64
      %p67 = scmp.ne.s32.totalorder %s50, %s66
      %p68 = scmp.eq.s32.totalorder %s30, 0
      %p69 = por %p67, %p68
      %s70 = ssub.s32 %s31, %s43
      %p71 = scmp.eq.s32.totalorder %s70, 0
      %s73 = sadd.s32 %s72, 1
      %s74 = scalar_select %p71, %s72, %s73
      %p77 = pneg %p71
      %p78 = scmp.eq.s32.totalorder %s24, 7
      %p79 = por %p77, %p78
      %p80 = scmp.ne.s32.totalorder %s72, %s75
      %p81 = scmp.eq.s32.totalorder %s24, 0
      %p82 = por %p80, %p81
      %p83 = scmp.ne.s32.totalorder %s72, %s75
      %p84 = scmp.eq.s32.totalorder %s29, 7
      %p85 = por %p83, %p84
      %p86 = scmp.ne.s32.totalorder %s75, %s76
      %p87 = scmp.eq.s32.totalorder %s29, 0
      %p88 = por %p86, %p87
      %p89 = scmp.ne.s32.totalorder %s75, %s76
      %p90 = scmp.eq.s32.totalorder %s30, 7
      %p91 = por %p89, %p90
      %p93 = scmp.ne.s32.totalorder %s76, %s92
      %p94 = scmp.eq.s32.totalorder %s30, 0
      %p95 = por %p93, %p94
      %s96 = ssub.s32 %s31, %s43
      %p97 = scmp.eq.s32.totalorder %s96, 0
      %s99 = sadd.s32 %s98, 1
      %s100 = scalar_select %p97, %s98, %s99
      %p103 = pneg %p97
      %p104 = scmp.eq.s32.totalorder %s24, 7
      %p105 = por %p103, %p104
      %p106 = scmp.ne.s32.totalorder %s98, %s101
      %p107 = scmp.eq.s32.totalorder %s24, 0
      %p108 = por %p106, %p107
      %p109 = scmp.ne.s32.totalorder %s98, %s101
      %p110 = scmp.eq.s32.totalorder %s29, 7
      %p111 = por %p109, %p110
      %p112 = scmp.ne.s32.totalorder %s101, %s102
      %p113 = scmp.eq.s32.totalorder %s29, 0
      %p114 = por %p112, %p113
      %p115 = scmp.ne.s32.totalorder %s101, %s102
      %p116 = scmp.eq.s32.totalorder %s30, 7
      %p117 = por %p115, %p116
      %p119 = scmp.ne.s32.totalorder %s102, %s118
      %p120 = scmp.eq.s32.totalorder %s30, 0
      %p121 = por %p119, %p120
      %s122 = ssub.s32 %s31, %s43
      %p123 = scmp.eq.s32.totalorder %s122, 0
      %s125 = sadd.s32 %s124, 1
      %s126 = scalar_select %p123, %s124, %s125
      %p129 = pneg %p123
      %p130 = scmp.eq.s32.totalorder %s24, 7
      %p131 = por %p129, %p130
      %p132 = scmp.ne.s32.totalorder %s124, %s127
      %p133 = scmp.eq.s32.totalorder %s24, 0
      %p134 = por %p132, %p133
      %p135 = scmp.ne.s32.totalorder %s124, %s127
      %p136 = scmp.eq.s32.totalorder %s29, 7
      %p137 = por %p135, %p136
      %p138 = scmp.ne.s32.totalorder %s127, %s128
      %p139 = scmp.eq.s32.totalorder %s29, 0
      %p140 = por %p138, %p139
      %p141 = scmp.ne.s32.totalorder %s127, %s128
      %p142 = scmp.eq.s32.totalorder %s30, 7
      %p143 = por %p141, %p142
      %p145 = scmp.ne.s32.totalorder %s128, %s144
      %p146 = scmp.eq.s32.totalorder %s30, 0
      %p147 = por %p145, %p146
      %s148 = ssub.s32 %s32, %s39
      %p149 = scmp.eq.s32.totalorder %s148, 0
      %s151 = sadd.s32 %s150, 1
      %s152 = scalar_select %p149, %s150, %s151
      %p155 = pneg %p149
      %p156 = scmp.eq.s32.totalorder %s24, 7
      %p157 = por %p155, %p156
      %p158 = scmp.ne.s32.totalorder %s150, %s153
      %p159 = scmp.eq.s32.totalorder %s24, 0
      %p160 = por %p158, %p159
      %p161 = scmp.ne.s32.totalorder %s150, %s153
      %p162 = scmp.eq.s32.totalorder %s29, 7
      %p163 = por %p161, %p162
      %p164 = scmp.ne.s32.totalorder %s153, %s154
      %p165 = scmp.eq.s32.totalorder %s29, 0
      %p166 = por %p164, %p165
      %p167 = scmp.ne.s32.totalorder %s153, %s154
      %p168 = scmp.eq.s32.totalorder %s30, 7
      %p169 = por %p167, %p168
      %p171 = scmp.ne.s32.totalorder %s154, %s170
      %p172 = scmp.eq.s32.totalorder %s30, 0
      %p173 = por %p171, %p172
      %s174 = ssub.s32 %s32, %s39
      %p175 = scmp.eq.s32.totalorder %s174, 0
      %s177 = sadd.s32 %s176, 1
      %s178 = scalar_select %p175, %s176, %s177
      %p181 = pneg %p175
      %p182 = scmp.eq.s32.totalorder %s24, 7
      %p183 = por %p181, %p182
      %p184 = scmp.ne.s32.totalorder %s176, %s179
      %p185 = scmp.eq.s32.totalorder %s24, 0
      %p186 = por %p184, %p185
      %p187 = scmp.ne.s32.totalorder %s176, %s179
      %p188 = scmp.eq.s32.totalorder %s29, 7
      %p189 = por %p187, %p188
      %p190 = scmp.ne.s32.totalorder %s179, %s180
      %p191 = scmp.eq.s32.totalorder %s29, 0
      %p192 = por %p190, %p191
      %p193 = scmp.ne.s32.totalorder %s179, %s180
      %p194 = scmp.eq.s32.totalorder %s30, 7
      %p195 = por %p193, %p194
      %p197 = scmp.ne.s32.totalorder %s180, %s196
      %p198 = scmp.eq.s32.totalorder %s30, 0
      %p199 = por %p197, %p198
      %s200 = ssub.s32 %s32, %s39
      %p201 = scmp.eq.s32.totalorder %s200, 0
      %s203 = sadd.s32 %s202, 1
      %s204 = scalar_select %p201, %s202, %s203
      %p207 = pneg %p201
      %p208 = scmp.eq.s32.totalorder %s24, 7
      %p209 = por %p207, %p208
      %p210 = scmp.ne.s32.totalorder %s202, %s205
      %p211 = scmp.eq.s32.totalorder %s24, 0
      %p212 = por %p210, %p211
      %p213 = scmp.ne.s32.totalorder %s202, %s205
      %p214 = scmp.eq.s32.totalorder %s29, 7
      %p215 = por %p213, %p214
      %p216 = scmp.ne.s32.totalorder %s205, %s206
      %p217 = scmp.eq.s32.totalorder %s29, 0
      %p218 = por %p216, %p217
      %p219 = scmp.ne.s32.totalorder %s205, %s206
      %p220 = scmp.eq.s32.totalorder %s30, 7
      %p221 = por %p219, %p220
      %p223 = scmp.ne.s32.totalorder %s206, %s222
      %p224 = scmp.eq.s32.totalorder %s30, 0
      %p225 = por %p223, %p224
      %s226 = ssub.s32 %s32, %s39
      %p227 = scmp.eq.s32.totalorder %s226, 0
      %s229 = sadd.s32 %s228, 1
      %s230 = scalar_select %p227, %s228, %s229
      %p233 = pneg %p227
      %p234 = scmp.eq.s32.totalorder %s24, 7
      %p235 = por %p233, %p234
      %p236 = scmp.ne.s32.totalorder %s228, %s231
      %p237 = scmp.eq.s32.totalorder %s24, 0
      %p238 = por %p236, %p237
      %p239 = scmp.ne.s32.totalorder %s228, %s231
      %p240 = scmp.eq.s32.totalorder %s29, 7
      %p241 = por %p239, %p240
      %p242 = scmp.ne.s32.totalorder %s231, %s232
      %p243 = scmp.eq.s32.totalorder %s29, 0
      %p244 = por %p242, %p243
      %p245 = scmp.ne.s32.totalorder %s231, %s232
      %p246 = scmp.eq.s32.totalorder %s30, 7
      %p247 = por %p245, %p246
      %p249 = scmp.ne.s32.totalorder %s232, %s248
      %p250 = scmp.eq.s32.totalorder %s30, 0
      %p251 = por %p249, %p250
      %s252 = ssub.s32 %s32, %s39
      %p253 = scmp.eq.s32.totalorder %s252, 0
      %s255 = sadd.s32 %s254, 1
      %s256 = scalar_select %p253, %s254, %s255
      %p259 = pneg %p253
      %p260 = scmp.eq.s32.totalorder %s24, 7
      %p261 = por %p259, %p260
      %p262 = scmp.ne.s32.totalorder %s254, %s257
      %p263 = scmp.eq.s32.totalorder %s24, 0
      %p264 = por %p262, %p263
      %p265 = scmp.ne.s32.totalorder %s254, %s257
      %p266 = scmp.eq.s32.totalorder %s29, 7
      %p267 = por %p265, %p266
      %p268 = scmp.ne.s32.totalorder %s257, %s258
      %p269 = scmp.eq.s32.totalorder %s29, 0
      %p270 = por %p268, %p269
      %p271 = scmp.ne.s32.totalorder %s257, %s258
      %p272 = scmp.eq.s32.totalorder %s30, 7
      %p273 = por %p271, %p272
      %p275 = scmp.ne.s32.totalorder %s258, %s274
      %p276 = scmp.eq.s32.totalorder %s30, 0
      %p277 = por %p275, %p276
      %s278 = ssub.s32 %s32, %s39
      %p279 = scmp.eq.s32.totalorder %s278, 0
      %s281 = sadd.s32 %s280, 1
      %s282 = scalar_select %p279, %s280, %s281
      %p285 = pneg %p279
      %p286 = scmp.eq.s32.totalorder %s24, 7
      %p287 = por %p285, %p286
      %p288 = scmp.ne.s32.totalorder %s280, %s283
      %p289 = scmp.eq.s32.totalorder %s24, 0
      %p290 = por %p288, %p289
      %p291 = scmp.ne.s32.totalorder %s280, %s283
      %p292 = scmp.eq.s32.totalorder %s29, 7
      %p293 = por %p291, %p292
      %p294 = scmp.ne.s32.totalorder %s283, %s284
      %p295 = scmp.eq.s32.totalorder %s29, 0
      %p296 = por %p294, %p295
      %p297 = scmp.ne.s32.totalorder %s283, %s284
      %p298 = scmp.eq.s32.totalorder %s30, 7
      %p299 = por %p297, %p298
      %p301 = scmp.ne.s32.totalorder %s284, %s300
      %p302 = scmp.eq.s32.totalorder %s30, 0
      %p303 = por %p301, %p302
      %s304 = ssub.s32 %s32, %s39
      %p305 = scmp.eq.s32.totalorder %s304, 0
      %s307 = sadd.s32 %s306, 1
      %s308 = scalar_select %p305, %s306, %s307
      %p311 = pneg %p305
      %p312 = scmp.eq.s32.totalorder %s24, 7
      %p313 = por %p311, %p312
      %p314 = scmp.ne.s32.totalorder %s306, %s309
      %p315 = scmp.eq.s32.totalorder %s24, 0
      %p316 = por %p314, %p315
      %p317 = scmp.ne.s32.totalorder %s306, %s309
      %p318 = scmp.eq.s32.totalorder %s29, 7
      %p319 = por %p317, %p318
      %p320 = scmp.ne.s32.totalorder %s309, %s310
      %p321 = scmp.eq.s32.totalorder %s29, 0
      %p322 = por %p320, %p321
      %p323 = scmp.ne.s32.totalorder %s309, %s310
      %p324 = scmp.eq.s32.totalorder %s30, 7
      %p325 = por %p323, %p324
      %p327 = scmp.ne.s32.totalorder %s310, %s326
      %p328 = scmp.eq.s32.totalorder %s30, 0
      %p329 = por %p327, %p328
      %s331 = sadd.s32 %s330, 1
      %p334 = scmp.eq.s32.totalorder %s24, 7
      %p335 = scmp.ne.s32.totalorder %s330, %s332
      %p336 = scmp.eq.s32.totalorder %s24, 0
      %p337 = por %p335, %p336
      %p338 = scmp.ne.s32.totalorder %s330, %s332
      %p339 = scmp.eq.s32.totalorder %s29, 7
      %p340 = por %p338, %p339
      %p341 = scmp.ne.s32.totalorder %s332, %s333
      %p342 = scmp.eq.s32.totalorder %s29, 0
      %p343 = por %p341, %p342
      %p344 = scmp.ne.s32.totalorder %s332, %s333
      %p345 = scmp.eq.s32.totalorder %s30, 7
      %p346 = por %p344, %p345
      %p348 = scmp.ne.s32.totalorder %s333, %s347
      %p349 = scmp.eq.s32.totalorder %s30, 0
      %p350 = por %p348, %p349
      %s351 = ssub.s32 %s31, %s43
      %p352 = scmp.eq.s32.totalorder %s351, 0
      %s354 = sadd.s32 %s353, 1
      %s355 = scalar_select %p352, %s353, %s354
      %p358 = pneg %p352
      %p359 = scmp.eq.s32.totalorder %s24, 7
      %p360 = por %p358, %p359
      %p361 = scmp.ne.s32.totalorder %s353, %s356
      %p362 = scmp.eq.s32.totalorder %s24, 0
      %p363 = por %p361, %p362
      %p364 = scmp.ne.s32.totalorder %s353, %s356
      %p365 = scmp.eq.s32.totalorder %s29, 7
      %p366 = por %p364, %p365
      %p367 = scmp.ne.s32.totalorder %s356, %s357
      %p368 = scmp.eq.s32.totalorder %s29, 0
      %p369 = por %p367, %p368
      %p370 = scmp.ne.s32.totalorder %s356, %s357
      %p371 = scmp.eq.s32.totalorder %s30, 7
      %p372 = por %p370, %p371
      %p374 = scmp.ne.s32.totalorder %s357, %s373
      %p375 = scmp.eq.s32.totalorder %s30, 0
      %p376 = por %p374, %p375
      %p377 = scmp.le.s32.totalorder 1, %s24
      %p378 = scmp.lt.s32.totalorder %s24, 9
      %p379 = pnand %p377, %p378
      %p380 = pneg %p379
      // Predicated region
      $region9: #{tpu_custom_call.1} parent=5 // pred_check
        _
      $region10: #{tpu_custom_call.1} parent=5 // pred_check_branch
        %382 = sbr.rel (%p379) target = $region12
      $region11: #{tpu_custom_call.1} parent=5 // pred_region
        %s383 = ssub.s32 %s24, 1
        // Predicated region
        $region13: #{tpu_custom_call.1} parent=11 // pred_check
          %p384 = pneg %p343
        $region14: #{tpu_custom_call.1} parent=11 // pred_check_branch
          %386 = sbr.rel (%p384) target = $region16
        $region15: #{tpu_custom_call.1} parent=11 // pred_region
          _
        $region16: #{tpu_custom_call.1} parent=11 // pred_fallthru
          _
      $region12: #{tpu_custom_call.1} parent=5 // pred_fallthru
        _
      %p387 = scmp.lt.s32.totalorder %s24, 8
      // Predicated region
      $region17: #{tpu_custom_call.1} parent=5 // pred_check
        %p388 = pneg %p387
      $region18: #{tpu_custom_call.1} parent=5 // pred_check_branch
        %390 = sbr.rel (%p388) target = $region20
      $region19: #{tpu_custom_call.1} parent=5 // pred_region
        // Predicated region
        $region21: #{tpu_custom_call.1} parent=19 // pred_check
          %p391 = pneg %p56
        $region22: #{tpu_custom_call.1} parent=19 // pred_check_branch
          %393 = sbr.rel (%p391) target = $region24
        $region23: #{tpu_custom_call.1} parent=19 // pred_region
          %p394 = scmp.lt.s32.totalorder %s31, 1
          %s395 = scalar_select %p394, %s31, 1
          %s396 = smul.addr %s395, 16
          %s397 = smul.addr %s396, 8
          %s398 = scalar_lea.vmem %s0, %s397
        $region24: #{tpu_custom_call.1} parent=19 // pred_fallthru
          _
        // Predicated region
        $region25: #{tpu_custom_call.1} parent=19 // pred_check
          %p399 = pneg %p82
        $region26: #{tpu_custom_call.1} parent=19 // pred_check_branch
          %401 = sbr.rel (%p399) target = $region28
        $region27: #{tpu_custom_call.1} parent=19 // pred_region
          %p402 = scmp.lt.s32.totalorder %s31, 1
          %s403 = scalar_select %p402, %s31, 1
          %s404 = smul.addr %s403, 16
          %s405 = smul.addr %s404, 8
          %s406 = scalar_lea.vmem %s1, %s405
        $region28: #{tpu_custom_call.1} parent=19 // pred_fallthru
          _
        // Predicated region
        $region29: #{tpu_custom_call.1} parent=19 // pred_check
          %p407 = pneg %p108
        $region30: #{tpu_custom_call.1} parent=19 // pred_check_branch
          %409 = sbr.rel (%p407) target = $region32
        $region31: #{tpu_custom_call.1} parent=19 // pred_region
          %p410 = scmp.lt.s32.totalorder %s31, 1
          %s411 = scalar_select %p410, %s31, 1
          %s412 = smul.addr %s411, 16
          %s413 = smul.addr %s412, 8
          %s414 = scalar_lea.vmem %s2, %s413
        $region32: #{tpu_custom_call.1} parent=19 // pred_fallthru
          _
        // Predicated region
        $region33: #{tpu_custom_call.1} parent=19 // pred_check
          %p415 = pneg %p134
        $region34: #{tpu_custom_call.1} parent=19 // pred_check_branch
          %417 = sbr.rel (%p415) target = $region36
        $region35: #{tpu_custom_call.1} parent=19 // pred_region
          %s418 = sand.u32 %s124, 1
          %s419 = scalar_lea.sflag [#allocation3], %s418
          %s420 = sand.u32 %s124, 1
          %s421 = smul.addr %s420, 128
          %s422 = scalar_lea.vmem [#allocation2], %s421
          %s424 = ssub.s32 2048, 2048
          %425 = vsyncadd %s419, %s424
          %s426 = smul.addr %s31, 16
          %s427 = smul.addr %s426, 128
          %s428 = scalar_lea.hbm %s3, %s427
          %s429 = sshll.u32 %s422, 4
          %s430 = int_to_ptr.vmem [resolvable:$true] %s429
          %435 = dma.hbm_to_vmem [thread:$0]  %s428, 2048, %s430, %s419, 128, 128, 8
        $region36: #{tpu_custom_call.1} parent=19 // pred_fallthru
          _
        // Predicated region
        $region37: #{tpu_custom_call.1} parent=19 // pred_check
          %p436 = pneg %p160
        $region38: #{tpu_custom_call.1} parent=19 // pred_check_branch
          %438 = sbr.rel (%p436) target = $region40
        $region39: #{tpu_custom_call.1} parent=19 // pred_region
          %p439 = scmp.lt.s32.totalorder %s32, 3
          %s440 = scalar_select %p439, %s32, 3
          %s441 = smul.addr %s440, 16
          %s442 = smul.addr %s441, 4
          %s443 = scalar_lea.vmem %s4, %s442
        $region40: #{tpu_custom_call.1} parent=19 // pred_fallthru
          _
        // Predicated region
        $region41: #{tpu_custom_call.1} parent=19 // pred_check
          %p444 = pneg %p186
        $region42: #{tpu_custom_call.1} parent=19 // pred_check_branch
          %446 = sbr.rel (%p444) target = $region44
        $region43: #{tpu_custom_call.1} parent=19 // pred_region
          %p447 = scmp.lt.s32.totalorder %s32, 3
          %s448 = scalar_select %p447, %s32, 3
          %s449 = scalar_lea.vmem %s5, %s448
        $region44: #{tpu_custom_call.1} parent=19 // pred_fallthru
          _
        // Predicated region
        $region45: #{tpu_custom_call.1} parent=19 // pred_check
          %p450 = pneg %p212
        $region46: #{tpu_custom_call.1} parent=19 // pred_check_branch
          %452 = sbr.rel (%p450) target = $region48
        $region47: #{tpu_custom_call.1} parent=19 // pred_region
          %p453 = scmp.lt.s32.totalorder %s32, 3
          %s454 = scalar_select %p453, %s32, 3
          %s455 = smul.addr %s454, 16
          %s456 = smul.addr %s455, 4
          %s457 = scalar_lea.vmem %s6, %s456
        $region48: #{tpu_custom_call.1} parent=19 // pred_fallthru
          _
        // Predicated region
        $region49: #{tpu_custom_call.1} parent=19 // pred_check
          %p458 = pneg %p238
        $region50: #{tpu_custom_call.1} parent=19 // pred_check_branch
          %460 = sbr.rel (%p458) target = $region52
        $region51: #{tpu_custom_call.1} parent=19 // pred_region
          %p461 = scmp.lt.s32.totalorder %s32, 3
          %s462 = scalar_select %p461, %s32, 3
          %s463 = scalar_lea.vmem %s7, %s462
        $region52: #{tpu_custom_call.1} parent=19 // pred_fallthru
          _
        // Predicated region
        $region53: #{tpu_custom_call.1} parent=19 // pred_check
          %p464 = pneg %p264
        $region54: #{tpu_custom_call.1} parent=19 // pred_check_branch
          %466 = sbr.rel (%p464) target = $region56
        $region55: #{tpu_custom_call.1} parent=19 // pred_region
          %p467 = scmp.lt.s32.totalorder %s32, 3
          %s468 = scalar_select %p467, %s32, 3
          %s469 = smul.addr %s468, 16
          %s470 = smul.addr %s469, 4
          %s471 = scalar_lea.vmem %s8, %s470
        $region56: #{tpu_custom_call.1} parent=19 // pred_fallthru
          _
        // Predicated region
        $region57: #{tpu_custom_call.1} parent=19 // pred_check
          %p472 = pneg %p290
        $region58: #{tpu_custom_call.1} parent=19 // pred_check_branch
          %474 = sbr.rel (%p472) target = $region60
        $region59: #{tpu_custom_call.1} parent=19 // pred_region
          %p475 = scmp.lt.s32.totalorder %s32, 3
          %s476 = scalar_select %p475, %s32, 3
          %s477 = scalar_lea.vmem %s9, %s476
        $region60: #{tpu_custom_call.1} parent=19 // pred_fallthru
          _
        // Predicated region
        $region61: #{tpu_custom_call.1} parent=19 // pred_check
          %p478 = pneg %p316
        $region62: #{tpu_custom_call.1} parent=19 // pred_check_branch
          %480 = sbr.rel (%p478) target = $region64
        $region63: #{tpu_custom_call.1} parent=19 // pred_region
          %p481 = scmp.lt.s32.totalorder %s32, 3
          %s482 = scalar_select %p481, %s32, 3
          %s483 = smul.addr %s482, 4
          %s484 = smul.addr %s483, 4
          %s485 = scalar_lea.vmem %s10, %s484
        $region64: #{tpu_custom_call.1} parent=19 // pred_fallthru
          _
      $region20: #{tpu_custom_call.1} parent=5 // pred_fallthru
        _
      %p486 = scmp.le.s32.totalorder 1, %s24
      %p487 = scmp.lt.s32.totalorder %s24, 9
      %p488 = pnand %p486, %p487
      %p489 = pneg %p488
      // Predicated region
      $region65: #{tpu_custom_call.1} parent=5 // pred_check
        _
      $region66: #{tpu_custom_call.1} parent=5 // pred_check_branch
        %491 = sbr.rel (%p488) target = $region68
      $region67: #{tpu_custom_call.1} parent=5 // pred_region
        %s492 = ssub.s32 %s24, 1
        %s493 = sand.u32 %s127, 1
        %s494 = scalar_lea.sflag [#allocation3], %s493
        %s495 = sand.u32 %s127, 1
        %s496 = smul.addr %s495, 128
        %s497 = scalar_lea.vmem [#allocation2], %s496
        // Predicated region
        $region69: #{tpu_custom_call.1} parent=67 // pred_check
          %p498 = pneg %p140
        $region70: #{tpu_custom_call.1} parent=67 // pred_check_branch
          %500 = sbr.rel (%p498) target = $region72
        $region71: #{tpu_custom_call.1} parent=67 // pred_region
          %501 = dma.done %s494, 2048
        $region72: #{tpu_custom_call.1} parent=67 // pred_fallthru
          _
        %p502 = scmp.lt.s32.totalorder %s33, 1
        %s503 = scalar_select %p502, %s33, 1
        %s504 = smul.addr %s503, 16
        %s505 = smul.addr %s504, 8
        %s506 = scalar_lea.vmem %s0, %s505
        %p507 = pneg %p62
        %p508 = pneg %p59
        %p509 = scmp.lt.s32.totalorder %s33, 1
        %s510 = scalar_select %p509, %s33, 1
        %s511 = smul.addr %s510, 16
        %s512 = smul.addr %s511, 8
        %s513 = scalar_lea.vmem %s1, %s512
        %p514 = pneg %p88
        %p515 = pneg %p85
        %p516 = scmp.lt.s32.totalorder %s33, 1
        %s517 = scalar_select %p516, %s33, 1
        %s518 = smul.addr %s517, 16
        %s519 = smul.addr %s518, 8
        %s520 = scalar_lea.vmem %s2, %s519
        %p521 = pneg %p114
        %p522 = pneg %p111
        %s523 = sand.u32 %s127, 1
        %s524 = scalar_lea.sflag [#allocation3], %s523
        %s525 = sand.u32 %s127, 1
        %s526 = smul.addr %s525, 128
        %s527 = scalar_lea.vmem [#allocation2], %s526
        %p528 = pneg %p140
        %p529 = pneg %p137
        %p530 = scmp.lt.s32.totalorder %s34, 3
        %s531 = scalar_select %p530, %s34, 3
        %s532 = smul.addr %s531, 16
        %s533 = smul.addr %s532, 4
        %s534 = scalar_lea.vmem %s4, %s533
        %p535 = pneg %p166
        %p536 = pneg %p163
        %p537 = scmp.lt.s32.totalorder %s34, 3
        %s538 = scalar_select %p537, %s34, 3
        %s539 = scalar_lea.vmem %s5, %s538
        %p540 = pneg %p192
        %p541 = pneg %p189
        %p542 = scmp.lt.s32.totalorder %s34, 3
        %s543 = scalar_select %p542, %s34, 3
        %s544 = smul.addr %s543, 16
        %s545 = smul.addr %s544, 4
        %s546 = scalar_lea.vmem %s6, %s545
        %p547 = pneg %p218
        %p548 = pneg %p215
        %p549 = scmp.lt.s32.totalorder %s34, 3
        %s550 = scalar_select %p549, %s34, 3
        %s551 = scalar_lea.vmem %s7, %s550
        %p552 = pneg %p244
        %p553 = pneg %p241
        %p554 = scmp.lt.s32.totalorder %s34, 3
        %s555 = scalar_select %p554, %s34, 3
        %s556 = smul.addr %s555, 16
        %s557 = smul.addr %s556, 4
        %s558 = scalar_lea.vmem %s8, %s557
        %p559 = pneg %p270
        %p560 = pneg %p267
        %p561 = scmp.lt.s32.totalorder %s34, 3
        %s562 = scalar_select %p561, %s34, 3
        %s563 = scalar_lea.vmem %s9, %s562
        %p564 = pneg %p296
        %p565 = pneg %p293
        %p566 = scmp.lt.s32.totalorder %s34, 3
        %s567 = scalar_select %p566, %s34, 3
        %s568 = smul.addr %s567, 4
        %s569 = smul.addr %s568, 4
        %s570 = scalar_lea.vmem %s10, %s569
        %p571 = pneg %p322
        %p572 = pneg %p319
        %p573 = pneg %p343
        %p574 = pneg %p340
        %p575 = pneg %p369
        %p576 = pneg %p366
        %s577 = sand.u32 %s356, 1
        %s578 = scalar_lea.sflag [#allocation4], %s577
        %s579 = sand.u32 %s356, 1
        %s580 = smul.addr %s579, 128
        %s581 = scalar_lea.vmem [#allocation5], %s580
        %p582 = scmp.lt.s32.totalorder %s33, 1
        %s583 = scalar_select %p582, %s33, 1
        %s584 = smul.addr %s583, 16
        %s585 = smul.addr %s584, 8
        %s586 = scalar_lea.vmem %s0, %s585
        %p587 = scmp.lt.s32.totalorder %s33, 1
        %s588 = scalar_select %p587, %s33, 1
        %s589 = smul.addr %s588, 16
        %s590 = smul.addr %s589, 8
        %s591 = scalar_lea.vmem %s1, %s590
        %p592 = scmp.lt.s32.totalorder %s33, 1
        %s593 = scalar_select %p592, %s33, 1
        %s594 = smul.addr %s593, 16
        %s595 = smul.addr %s594, 8
        %s596 = scalar_lea.vmem %s2, %s595
        %p597 = scmp.lt.s32.totalorder %s34, 3
        %s598 = scalar_select %p597, %s34, 3
        %s599 = smul.addr %s598, 16
        %s600 = smul.addr %s599, 4
        %s601 = scalar_lea.vmem %s4, %s600
        %p602 = scmp.lt.s32.totalorder %s34, 3
        %s603 = scalar_select %p602, %s34, 3
        %s604 = scalar_lea.vmem %s5, %s603
        %p605 = scmp.lt.s32.totalorder %s34, 3
        %s606 = scalar_select %p605, %s34, 3
        %s607 = smul.addr %s606, 16
        %s608 = smul.addr %s607, 4
        %s609 = scalar_lea.vmem %s6, %s608
        %p610 = scmp.lt.s32.totalorder %s34, 3
        %s611 = scalar_select %p610, %s34, 3
        %s612 = scalar_lea.vmem %s7, %s611
        %p613 = scmp.lt.s32.totalorder %s34, 3
        %s614 = scalar_select %p613, %s34, 3
        %s615 = smul.addr %s614, 16
        %s616 = smul.addr %s615, 4
        %s617 = scalar_lea.vmem %s8, %s616
        %p618 = scmp.lt.s32.totalorder %s34, 3
        %s619 = scalar_select %p618, %s34, 3
        %s620 = scalar_lea.vmem %s9, %s619
        %p621 = scmp.lt.s32.totalorder %s34, 3
        %s622 = scalar_select %p621, %s34, 3
        %s623 = smul.addr %s622, 4
        %s624 = smul.addr %s623, 4
        %s625 = scalar_lea.vmem %s10, %s624
        %v627 = vld [vmem:[%s586] sm:$0xff]
        %v628 = vld [vmem:[%s586 + $0x8] sm:$0xff]
        %v629 = vld [vmem:[%s586 + $0x10] sm:$0xff]
        %v630 = vld [vmem:[%s586 + $0x18] sm:$0xff]
        %v631 = vld [vmem:[%s586 + $0x20] sm:$0xff]
        %v632 = vld [vmem:[%s586 + $0x28] sm:$0xff]
        %v633 = vld [vmem:[%s586 + $0x30] sm:$0xff]
        %v634 = vld [vmem:[%s586 + $0x38] sm:$0xff]
        %v635 = vld [vmem:[%s586 + $0x40] sm:$0xff]
        %v636 = vld [vmem:[%s586 + $0x48] sm:$0xff]
        %v637 = vld [vmem:[%s586 + $0x50] sm:$0xff]
        %v638 = vld [vmem:[%s586 + $0x58] sm:$0xff]
        %v639 = vld [vmem:[%s586 + $0x60] sm:$0xff]
        %v640 = vld [vmem:[%s586 + $0x68] sm:$0xff]
        %v641 = vld [vmem:[%s586 + $0x70] sm:$0xff]
        %v642 = vld [vmem:[%s586 + $0x78] sm:$0xff]
        %v643 = vpack.c.bf16 %v628, %v627
        %v644 = vpack.c.bf16 %v630, %v629
        %v645 = vpack.c.bf16 %v632, %v631
        %v646 = vpack.c.bf16 %v634, %v633
        %v647 = vpack.c.bf16 %v636, %v635
        %v648 = vpack.c.bf16 %v638, %v637
        %v649 = vpack.c.bf16 %v640, %v639
        %v650 = vpack.c.bf16 %v642, %v641
        %v651 = vld [vmem:[%s591] sm:$0xff]
        %v652 = vld [vmem:[%s591 + $0x8] sm:$0xff]
        %v653 = vld [vmem:[%s591 + $0x10] sm:$0xff]
        %v654 = vld [vmem:[%s591 + $0x18] sm:$0xff]
        %v655 = vld [vmem:[%s591 + $0x20] sm:$0xff]
        %v656 = vld [vmem:[%s591 + $0x28] sm:$0xff]
        %v657 = vld [vmem:[%s591 + $0x30] sm:$0xff]
        %v658 = vld [vmem:[%s591 + $0x38] sm:$0xff]
        %v659 = vld [vmem:[%s591 + $0x40] sm:$0xff]
        %v660 = vld [vmem:[%s591 + $0x48] sm:$0xff]
        %v661 = vld [vmem:[%s591 + $0x50] sm:$0xff]
        %v662 = vld [vmem:[%s591 + $0x58] sm:$0xff]
        %v663 = vld [vmem:[%s591 + $0x60] sm:$0xff]
        %v664 = vld [vmem:[%s591 + $0x68] sm:$0xff]
        %v665 = vld [vmem:[%s591 + $0x70] sm:$0xff]
        %v666 = vld [vmem:[%s591 + $0x78] sm:$0xff]
        %v667 = vpack.c.bf16 %v652, %v651
        %v668 = vpack.c.bf16 %v654, %v653
        %v669 = vpack.c.bf16 %v656, %v655
        %v670 = vpack.c.bf16 %v658, %v657
        %v671 = vpack.c.bf16 %v660, %v659
        %v672 = vpack.c.bf16 %v662, %v661
        %v673 = vpack.c.bf16 %v664, %v663
        %v674 = vpack.c.bf16 %v666, %v665
        %v675 = vld [vmem:[%s596] sm:$0xff]
        %v676 = vld [vmem:[%s596 + $0x8] sm:$0xff]
        %v677 = vld [vmem:[%s596 + $0x10] sm:$0xff]
        %v678 = vld [vmem:[%s596 + $0x18] sm:$0xff]
        %v679 = vld [vmem:[%s596 + $0x20] sm:$0xff]
        %v680 = vld [vmem:[%s596 + $0x28] sm:$0xff]
        %v681 = vld [vmem:[%s596 + $0x30] sm:$0xff]
        %v682 = vld [vmem:[%s596 + $0x38] sm:$0xff]
        %v683 = vld [vmem:[%s596 + $0x40] sm:$0xff]
        %v684 = vld [vmem:[%s596 + $0x48] sm:$0xff]
        %v685 = vld [vmem:[%s596 + $0x50] sm:$0xff]
        %v686 = vld [vmem:[%s596 + $0x58] sm:$0xff]
        %v687 = vld [vmem:[%s596 + $0x60] sm:$0xff]
        %v688 = vld [vmem:[%s596 + $0x68] sm:$0xff]
        %v689 = vld [vmem:[%s596 + $0x70] sm:$0xff]
        %v690 = vld [vmem:[%s596 + $0x78] sm:$0xff]
        %v691 = vpack.c.bf16 %v676, %v675
        %v692 = vpack.c.bf16 %v678, %v677
        %v693 = vpack.c.bf16 %v680, %v679
        %v694 = vpack.c.bf16 %v682, %v681
        %v695 = vpack.c.bf16 %v684, %v683
        %v696 = vpack.c.bf16 %v686, %v685
        %v697 = vpack.c.bf16 %v688, %v687
        %v698 = vpack.c.bf16 %v690, %v689
        %v699 = vld [vmem:[%s601] sm:$0xf]
        %v700 = vld [vmem:[%s601 + $0x4] sm:$0xf]
        %v701 = vld [vmem:[%s601 + $0x8] sm:$0xf]
        %v702 = vld [vmem:[%s601 + $0xc] sm:$0xf]
        %v703 = vld [vmem:[%s601 + $0x10] sm:$0xf]
        %v704 = vld [vmem:[%s601 + $0x14] sm:$0xf]
        %v705 = vld [vmem:[%s601 + $0x18] sm:$0xf]
        %v706 = vld [vmem:[%s601 + $0x1c] sm:$0xf]
        %v707 = vld [vmem:[%s601 + $0x20] sm:$0xf]
        %v708 = vld [vmem:[%s601 + $0x24] sm:$0xf]
        %v709 = vld [vmem:[%s601 + $0x28] sm:$0xf]
        %v710 = vld [vmem:[%s601 + $0x2c] sm:$0xf]
        %v711 = vld [vmem:[%s601 + $0x30] sm:$0xf]
        %v712 = vld [vmem:[%s601 + $0x34] sm:$0xf]
        %v713 = vld [vmem:[%s601 + $0x38] sm:$0xf]
        %v714 = vld [vmem:[%s601 + $0x3c] sm:$0xf]
        %v715 = vld [vmem:[%s604] sm:$0x1]
        %v717 = vlaneseq
        %v718 = vshrl.u32 %v717, 7
        %v719 = vsub.s32 0, %v718
        %v720 = vrot.slane %v715, %v719
        %v738 = vunpack.c.l.b16 %v699
        %v739 = vunpack.c.l.b16 %v700
        %v740 = vunpack.c.l.b16 %v701
        %v741 = vunpack.c.l.b16 %v702
        %v742 = vunpack.c.l.b16 %v703
        %v743 = vunpack.c.l.b16 %v704
        %v744 = vunpack.c.l.b16 %v705
        %v745 = vunpack.c.l.b16 %v706
        %v746 = vunpack.c.l.b16 %v707
        %v747 = vunpack.c.l.b16 %v708
        %v748 = vunpack.c.l.b16 %v709
        %v749 = vunpack.c.l.b16 %v710
        %v750 = vunpack.c.l.b16 %v711
        %v751 = vunpack.c.l.b16 %v712
        %v752 = vunpack.c.l.b16 %v713
        %v753 = vunpack.c.l.b16 %v714
        %v754 = vpack.c.b16 %v739, %v738
        %v755 = vpack.c.b16 %v741, %v740
        %v756 = vpack.c.b16 %v743, %v742
        %v757 = vpack.c.b16 %v745, %v744
        %v758 = vpack.c.b16 %v747, %v746
        %v759 = vpack.c.b16 %v749, %v748
        %v760 = vpack.c.b16 %v751, %v750
        %v761 = vpack.c.b16 %v753, %v752
        %770 = vmatprep.subr.bf16.mxu0 0
        %771 = vmatpush1.bf16.msra.mxu0 %v754
        %772 = vmatprep.subr.bf16.mxu0 0
        %773 = vmatpush1.bf16.msra.mxu0 %v755
        %774 = vmatprep.subr.bf16.mxu0 0
        %775 = vmatpush1.bf16.msra.mxu0 %v756
        %776 = vmatprep.subr.bf16.mxu0 0
        %777 = vmatpush1.bf16.msra.mxu0 %v757
        %778 = vmatprep.subr.bf16.mxu0 0
        %779 = vmatpush1.bf16.msra.mxu0 %v758
        %780 = vmatprep.subr.bf16.mxu0 0
        %781 = vmatpush1.bf16.msra.mxu0 %v759
        %782 = vmatprep.subr.bf16.mxu0 0
        %783 = vmatpush1.bf16.msra.mxu0 %v760
        %784 = vmatprep.subr.bf16.mxu0 0
        %785 = vmatpush1.bf16.msra.mxu0 %v761
        %786 = vmatprep.subr.bf16.mxu0 0
        %787 = vmatpush1.bf16.msra.mxu0 0
        %788 = vmatprep.subr.bf16.mxu0 0
        %789 = vmatpush1.bf16.msra.mxu0 0
        %790 = vmatprep.subr.bf16.mxu0 0
        %791 = vmatpush1.bf16.msra.mxu0 0
        %792 = vmatprep.subr.bf16.mxu0 0
        %793 = vmatpush1.bf16.msra.mxu0 0
        %794 = vmatprep.subr.bf16.mxu0 0
        %795 = vmatpush1.bf16.msra.mxu0 0
        %796 = vmatprep.subr.bf16.mxu0 0
        %797 = vmatpush1.bf16.msra.mxu0 0
        %798 = vmatprep.subr.bf16.mxu0 0
        %799 = vmatpush1.bf16.msra.mxu0 0
        %800 = vmatprep.subr.bf16.mxu0 0
        %801 = vmatpush1.bf16.msra.mxu0 0
        %802 = vmatprep.mubr.bf16.mxu0 0
        %803 = vmatmul.mubr.bf16.gmra.mrb[0].mxu0 %v643
        %v804 = vpop.f32.mrb[0].mxu0
        %v805 = vadd.f32 %v720, %v804
        %v806 = vpop.f32.mrb[0].mxu0
        %v807 = vpop.f32.mrb[0].mxu0
        %v808 = vadd.f32 %v720, %v807
        %v809 = vpop.f32.mrb[0].mxu0
        %810 = vmatprep.mubr.bf16.mxu0 0
        %811 = vmatmul.mubr.bf16.gmra.mrb[0].mxu0 %v644
        %v812 = vpop.f32.mrb[0].mxu0
        %v813 = vadd.f32 %v720, %v812
        %v814 = vpop.f32.mrb[0].mxu0
        %v815 = vpop.f32.mrb[0].mxu0
        %v816 = vadd.f32 %v720, %v815
        %v817 = vpop.f32.mrb[0].mxu0
        %818 = vmatprep.mubr.bf16.mxu0 0
        %819 = vmatmul.mubr.bf16.gmra.mrb[0].mxu0 %v645
        %v820 = vpop.f32.mrb[0].mxu0
        %v821 = vadd.f32 %v720, %v820
        %v822 = vpop.f32.mrb[0].mxu0
        %v823 = vpop.f32.mrb[0].mxu0
        %v824 = vadd.f32 %v720, %v823
        %v825 = vpop.f32.mrb[0].mxu0
        %826 = vmatprep.mubr.bf16.mxu0 0
        %827 = vmatmul.mubr.bf16.gmra.mrb[0].mxu0 %v646
        %v828 = vpop.f32.mrb[0].mxu0
        %v829 = vadd.f32 %v720, %v828
        %v830 = vpop.f32.mrb[0].mxu0
        %v831 = vpop.f32.mrb[0].mxu0
        %v832 = vadd.f32 %v720, %v831
        %v833 = vpop.f32.mrb[0].mxu0
        %834 = vmatprep.mubr.bf16.mxu0 0
        %835 = vmatmul.mubr.bf16.gmra.mrb[0].mxu0 %v647
        %v836 = vpop.f32.mrb[0].mxu0
        %v837 = vadd.f32 %v720, %v836
        %v838 = vpop.f32.mrb[0].mxu0
        %v839 = vpop.f32.mrb[0].mxu0
        %v840 = vadd.f32 %v720, %v839
        %v841 = vpop.f32.mrb[0].mxu0
        %842 = vmatprep.mubr.bf16.mxu0 0
        %843 = vmatmul.mubr.bf16.gmra.mrb[0].mxu0 %v648
        %v844 = vpop.f32.mrb[0].mxu0
        %v845 = vadd.f32 %v720, %v844
        %v846 = vpop.f32.mrb[0].mxu0
        %v847 = vpop.f32.mrb[0].mxu0
        %v848 = vadd.f32 %v720, %v847
        %v849 = vpop.f32.mrb[0].mxu0
        %850 = vmatprep.mubr.bf16.mxu0 0
        %851 = vmatmul.mubr.bf16.gmra.mrb[0].mxu0 %v649
        %v852 = vpop.f32.mrb[0].mxu0
        %v853 = vadd.f32 %v720, %v852
        %v854 = vpop.f32.mrb[0].mxu0
        %v855 = vpop.f32.mrb[0].mxu0
        %v856 = vadd.f32 %v720, %v855
        %v857 = vpop.f32.mrb[0].mxu0
        %858 = vmatprep.mubr.bf16.mxu0 0
        %859 = vmatmul.mubr.bf16.gmra.mrb[0].mxu0 %v650
        %v860 = vpop.f32.mrb[0].mxu0
        %v861 = vadd.f32 %v720, %v860
        %v862 = vpop.f32.mrb[0].mxu0
        %v863 = vpop.f32.mrb[0].mxu0
        %v864 = vadd.f32 %v720, %v863
        %v865 = vpop.f32.mrb[0].mxu0
        %866 = vdwg.mxu0
        %v867 = vld [vmem:[%s609] sm:$0xf]
        %v868 = vld [vmem:[%s609 + $0x4] sm:$0xf]
        %v869 = vld [vmem:[%s609 + $0x8] sm:$0xf]
        %v870 = vld [vmem:[%s609 + $0xc] sm:$0xf]
        %v871 = vld [vmem:[%s609 + $0x10] sm:$0xf]
        %v872 = vld [vmem:[%s609 + $0x14] sm:$0xf]
        %v873 = vld [vmem:[%s609 + $0x18] sm:$0xf]
        %v874 = vld [vmem:[%s609 + $0x1c] sm:$0xf]
        %v875 = vld [vmem:[%s609 + $0x20] sm:$0xf]
        %v876 = vld [vmem:[%s609 + $0x24] sm:$0xf]
        %v877 = vld [vmem:[%s609 + $0x28] sm:$0xf]
        %v878 = vld [vmem:[%s609 + $0x2c] sm:$0xf]
        %v879 = vld [vmem:[%s609 + $0x30] sm:$0xf]
        %v880 = vld [vmem:[%s609 + $0x34] sm:$0xf]
        %v881 = vld [vmem:[%s609 + $0x38] sm:$0xf]
        %v882 = vld [vmem:[%s609 + $0x3c] sm:$0xf]
        %v883 = vld [vmem:[%s612] sm:$0x1]
        %v885 = vlaneseq
        %v886 = vshrl.u32 %v885, 7
        %v887 = vsub.s32 0, %v886
        %v888 = vrot.slane %v883, %v887
        %v906 = vunpack.c.l.b16 %v867
        %v907 = vunpack.c.l.b16 %v868
        %v908 = vunpack.c.l.b16 %v869
        %v909 = vunpack.c.l.b16 %v870
        %v910 = vunpack.c.l.b16 %v871
        %v911 = vunpack.c.l.b16 %v872
        %v912 = vunpack.c.l.b16 %v873
        %v913 = vunpack.c.l.b16 %v874
        %v914 = vunpack.c.l.b16 %v875
        %v915 = vunpack.c.l.b16 %v876
        %v916 = vunpack.c.l.b16 %v877
        %v917 = vunpack.c.l.b16 %v878
        %v918 = vunpack.c.l.b16 %v879
        %v919 = vunpack.c.l.b16 %v880
        %v920 = vunpack.c.l.b16 %v881
        %v921 = vunpack.c.l.b16 %v882
        %v922 = vpack.c.b16 %v907, %v906
        %v923 = vpack.c.b16 %v909, %v908
        %v924 = vpack.c.b16 %v911, %v910
        %v925 = vpack.c.b16 %v913, %v912
        %v926 = vpack.c.b16 %v915, %v914
        %v927 = vpack.c.b16 %v917, %v916
        %v928 = vpack.c.b16 %v919, %v918
        %v929 = vpack.c.b16 %v921, %v920
        %938 = vmatprep.subr.bf16.mxu0 0
        %939 = vmatpush1.bf16.msra.mxu0 %v922
        %940 = vmatprep.subr.bf16.mxu0 0
        %941 = vmatpush1.bf16.msra.mxu0 %v923
        %942 = vmatprep.subr.bf16.mxu0 0
        %943 = vmatpush1.bf16.msra.mxu0 %v924
        %944 = vmatprep.subr.bf16.mxu0 0
        %945 = vmatpush1.bf16.msra.mxu0 %v925
        %946 = vmatprep.subr.bf16.mxu0 0
        %947 = vmatpush1.bf16.msra.mxu0 %v926
        %948 = vmatprep.subr.bf16.mxu0 0
        %949 = vmatpush1.bf16.msra.mxu0 %v927
        %950 = vmatprep.subr.bf16.mxu0 0
        %951 = vmatpush1.bf16.msra.mxu0 %v928
        %952 = vmatprep.subr.bf16.mxu0 0
        %953 = vmatpush1.bf16.msra.mxu0 %v929
        %954 = vmatprep.subr.bf16.mxu0 0
        %955 = vmatpush1.bf16.msra.mxu0 0
        %956 = vmatprep.subr.bf16.mxu0 0
        %957 = vmatpush1.bf16.msra.mxu0 0
        %958 = vmatprep.subr.bf16.mxu0 0
        %959 = vmatpush1.bf16.msra.mxu0 0
        %960 = vmatprep.subr.bf16.mxu0 0
        %961 = vmatpush1.bf16.msra.mxu0 0
        %962 = vmatprep.subr.bf16.mxu0 0
        %963 = vmatpush1.bf16.msra.mxu0 0
        %964 = vmatprep.subr.bf16.mxu0 0
        %965 = vmatpush1.bf16.msra.mxu0 0
        %966 = vmatprep.subr.bf16.mxu0 0
        %967 = vmatpush1.bf16.msra.mxu0 0
        %968 = vmatprep.subr.bf16.mxu0 0
        %969 = vmatpush1.bf16.msra.mxu0 0
        %970 = vmatprep.mubr.bf16.mxu0 0
        %971 = vmatmul.mubr.bf16.gmra.mrb[0].mxu0 %v667
        %v972 = vpop.f32.mrb[0].mxu0
        %v973 = vadd.f32 %v888, %v972
        %v974 = vpop.f32.mrb[0].mxu0
        %v975 = vpop.f32.mrb[0].mxu0
        %v976 = vadd.f32 %v888, %v975
        %v977 = vpop.f32.mrb[0].mxu0
        %978 = vmatprep.mubr.bf16.mxu0 0
        %979 = vmatmul.mubr.bf16.gmra.mrb[0].mxu0 %v668
        %v980 = vpop.f32.mrb[0].mxu0
        %v981 = vadd.f32 %v888, %v980
        %v982 = vpop.f32.mrb[0].mxu0
        %v983 = vpop.f32.mrb[0].mxu0
        %v984 = vadd.f32 %v888, %v983
        %v985 = vpop.f32.mrb[0].mxu0
        %986 = vmatprep.mubr.bf16.mxu0 0
        %987 = vmatmul.mubr.bf16.gmra.mrb[0].mxu0 %v669
        %v988 = vpop.f32.mrb[0].mxu0
        %v989 = vadd.f32 %v888, %v988
        %v990 = vpop.f32.mrb[0].mxu0
        %v991 = vpop.f32.mrb[0].mxu0
        %v992 = vadd.f32 %v888, %v991
        %v993 = vpop.f32.mrb[0].mxu0
        %994 = vmatprep.mubr.bf16.mxu0 0
        %995 = vmatmul.mubr.bf16.gmra.mrb[0].mxu0 %v670
        %v996 = vpop.f32.mrb[0].mxu0
        %v997 = vadd.f32 %v888, %v996
        %v998 = vpop.f32.mrb[0].mxu0
        %v999 = vpop.f32.mrb[0].mxu0
        %v1000 = vadd.f32 %v888, %v999
        %v1001 = vpop.f32.mrb[0].mxu0
        %1002 = vmatprep.mubr.bf16.mxu0 0
        %1003 = vmatmul.mubr.bf16.gmra.mrb[0].mxu0 %v671
        %v1004 = vpop.f32.mrb[0].mxu0
        %v1005 = vadd.f32 %v888, %v1004
        %v1006 = vpop.f32.mrb[0].mxu0
        %v1007 = vpop.f32.mrb[0].mxu0
        %v1008 = vadd.f32 %v888, %v1007
        %v1009 = vpop.f32.mrb[0].mxu0
        %1010 = vmatprep.mubr.bf16.mxu0 0
        %1011 = vmatmul.mubr.bf16.gmra.mrb[0].mxu0 %v672
        %v1012 = vpop.f32.mrb[0].mxu0
        %v1013 = vadd.f32 %v888, %v1012
        %v1014 = vpop.f32.mrb[0].mxu0
        %v1015 = vpop.f32.mrb[0].mxu0
        %v1016 = vadd.f32 %v888, %v1015
        %v1017 = vpop.f32.mrb[0].mxu0
        %1018 = vmatprep.mubr.bf16.mxu0 0
        %1019 = vmatmul.mubr.bf16.gmra.mrb[0].mxu0 %v673
        %v1020 = vpop.f32.mrb[0].mxu0
        %v1021 = vadd.f32 %v888, %v1020
        %v1022 = vpop.f32.mrb[0].mxu0
        %v1023 = vpop.f32.mrb[0].mxu0
        %v1024 = vadd.f32 %v888, %v1023
        %v1025 = vpop.f32.mrb[0].mxu0
        %1026 = vmatprep.mubr.bf16.mxu0 0
        %1027 = vmatmul.mubr.bf16.gmra.mrb[0].mxu0 %v674
        %v1028 = vpop.f32.mrb[0].mxu0
        %v1029 = vadd.f32 %v888, %v1028
        %v1030 = vpop.f32.mrb[0].mxu0
        %v1031 = vpop.f32.mrb[0].mxu0
        %v1032 = vadd.f32 %v888, %v1031
        %v1033 = vpop.f32.mrb[0].mxu0
        %1034 = vdwg.mxu0
        %v1035 = vld [vmem:[%s617] sm:$0xf]
        %v1036 = vld [vmem:[%s617 + $0x4] sm:$0xf]
        %v1037 = vld [vmem:[%s617 + $0x8] sm:$0xf]
        %v1038 = vld [vmem:[%s617 + $0xc] sm:$0xf]
        %v1039 = vld [vmem:[%s617 + $0x10] sm:$0xf]
        %v1040 = vld [vmem:[%s617 + $0x14] sm:$0xf]
        %v1041 = vld [vmem:[%s617 + $0x18] sm:$0xf]
        %v1042 = vld [vmem:[%s617 + $0x1c] sm:$0xf]
        %v1043 = vld [vmem:[%s617 + $0x20] sm:$0xf]
        %v1044 = vld [vmem:[%s617 + $0x24] sm:$0xf]
        %v1045 = vld [vmem:[%s617 + $0x28] sm:$0xf]
        %v1046 = vld [vmem:[%s617 + $0x2c] sm:$0xf]
        %v1047 = vld [vmem:[%s617 + $0x30] sm:$0xf]
        %v1048 = vld [vmem:[%s617 + $0x34] sm:$0xf]
        %v1049 = vld [vmem:[%s617 + $0x38] sm:$0xf]
        %v1050 = vld [vmem:[%s617 + $0x3c] sm:$0xf]
        %v1051 = vld [vmem:[%s620] sm:$0x1]
        %v1053 = vlaneseq
        %v1054 = vshrl.u32 %v1053, 7
        %v1055 = vsub.s32 0, %v1054
        %v1056 = vrot.slane %v1051, %v1055
        %v1074 = vunpack.c.l.b16 %v1035
        %v1075 = vunpack.c.l.b16 %v1036
        %v1076 = vunpack.c.l.b16 %v1037
        %v1077 = vunpack.c.l.b16 %v1038
        %v1078 = vunpack.c.l.b16 %v1039
        %v1079 = vunpack.c.l.b16 %v1040
        %v1080 = vunpack.c.l.b16 %v1041
        %v1081 = vunpack.c.l.b16 %v1042
        %v1082 = vunpack.c.l.b16 %v1043
        %v1083 = vunpack.c.l.b16 %v1044
        %v1084 = vunpack.c.l.b16 %v1045
        %v1085 = vunpack.c.l.b16 %v1046
        %v1086 = vunpack.c.l.b16 %v1047
        %v1087 = vunpack.c.l.b16 %v1048
        %v1088 = vunpack.c.l.b16 %v1049
        %v1089 = vunpack.c.l.b16 %v1050
        %v1090 = vpack.c.b16 %v1075, %v1074
        %v1091 = vpack.c.b16 %v1077, %v1076
        %v1092 = vpack.c.b16 %v1079, %v1078
        %v1093 = vpack.c.b16 %v1081, %v1080
        %v1094 = vpack.c.b16 %v1083, %v1082
        %v1095 = vpack.c.b16 %v1085, %v1084
        %v1096 = vpack.c.b16 %v1087, %v1086
        %v1097 = vpack.c.b16 %v1089, %v1088
        %1106 = vmatprep.subr.bf16.mxu0 0
        %1107 = vmatpush1.bf16.msra.mxu0 %v1090
        %1108 = vmatprep.subr.bf16.mxu0 0
        %1109 = vmatpush1.bf16.msra.mxu0 %v1091
        %1110 = vmatprep.subr.bf16.mxu0 0
        %1111 = vmatpush1.bf16.msra.mxu0 %v1092
        %1112 = vmatprep.subr.bf16.mxu0 0
        %1113 = vmatpush1.bf16.msra.mxu0 %v1093
        %1114 = vmatprep.subr.bf16.mxu0 0
        %1115 = vmatpush1.bf16.msra.mxu0 %v1094
        %1116 = vmatprep.subr.bf16.mxu0 0
        %1117 = vmatpush1.bf16.msra.mxu0 %v1095
        %1118 = vmatprep.subr.bf16.mxu0 0
        %1119 = vmatpush1.bf16.msra.mxu0 %v1096
        %1120 = vmatprep.subr.bf16.mxu0 0
        %1121 = vmatpush1.bf16.msra.mxu0 %v1097
        %1122 = vmatprep.subr.bf16.mxu0 0
        %1123 = vmatpush1.bf16.msra.mxu0 0
        %1124 = vmatprep.subr.bf16.mxu0 0
        %1125 = vmatpush1.bf16.msra.mxu0 0
        %1126 = vmatprep.subr.bf16.mxu0 0
        %1127 = vmatpush1.bf16.msra.mxu0 0
        %1128 = vmatprep.subr.bf16.mxu0 0
        %1129 = vmatpush1.bf16.msra.mxu0 0
        %1130 = vmatprep.subr.bf16.mxu0 0
        %1131 = vmatpush1.bf16.msra.mxu0 0
        %1132 = vmatprep.subr.bf16.mxu0 0
        %1133 = vmatpush1.bf16.msra.mxu0 0
        %1134 = vmatprep.subr.bf16.mxu0 0
        %1135 = vmatpush1.bf16.msra.mxu0 0
        %1136 = vmatprep.subr.bf16.mxu0 0
        %1137 = vmatpush1.bf16.msra.mxu0 0
        %1138 = vmatprep.mubr.bf16.mxu0 0
        %1139 = vmatmul.mubr.bf16.gmra.mrb[0].mxu0 %v691
        %v1140 = vpop.f32.mrb[0].mxu0
        %v1141 = vadd.f32 %v1056, %v1140
        %v1142 = vpop.f32.mrb[0].mxu0
        %v1143 = vpop.f32.mrb[0].mxu0
        %v1144 = vadd.f32 %v1056, %v1143
        %v1145 = vpop.f32.mrb[0].mxu0
        %1146 = vmatprep.mubr.bf16.mxu0 0
        %1147 = vmatmul.mubr.bf16.gmra.mrb[0].mxu0 %v692
        %v1148 = vpop.f32.mrb[0].mxu0
        %v1149 = vadd.f32 %v1056, %v1148
        %v1150 = vpop.f32.mrb[0].mxu0
        %v1151 = vpop.f32.mrb[0].mxu0
        %v1152 = vadd.f32 %v1056, %v1151
        %v1153 = vpop.f32.mrb[0].mxu0
        %1154 = vmatprep.mubr.bf16.mxu0 0
        %1155 = vmatmul.mubr.bf16.gmra.mrb[0].mxu0 %v693
        %v1156 = vpop.f32.mrb[0].mxu0
        %v1157 = vadd.f32 %v1056, %v1156
        %v1158 = vpop.f32.mrb[0].mxu0
        %v1159 = vpop.f32.mrb[0].mxu0
        %v1160 = vadd.f32 %v1056, %v1159
        %v1161 = vpop.f32.mrb[0].mxu0
        %1162 = vmatprep.mubr.bf16.mxu0 0
        %1163 = vmatmul.mubr.bf16.gmra.mrb[0].mxu0 %v694
        %v1164 = vpop.f32.mrb[0].mxu0
        %v1165 = vadd.f32 %v1056, %v1164
        %v1166 = vpop.f32.mrb[0].mxu0
        %v1167 = vpop.f32.mrb[0].mxu0
        %v1168 = vadd.f32 %v1056, %v1167
        %v1169 = vpop.f32.mrb[0].mxu0
        %1170 = vmatprep.mubr.bf16.mxu0 0
        %1171 = vmatmul.mubr.bf16.gmra.mrb[0].mxu0 %v695
        %v1172 = vpop.f32.mrb[0].mxu0
        %v1173 = vadd.f32 %v1056, %v1172
        %v1174 = vpop.f32.mrb[0].mxu0
        %v1175 = vpop.f32.mrb[0].mxu0
        %v1176 = vadd.f32 %v1056, %v1175
        %v1177 = vpop.f32.mrb[0].mxu0
        %1178 = vmatprep.mubr.bf16.mxu0 0
        %1179 = vmatmul.mubr.bf16.gmra.mrb[0].mxu0 %v696
        %v1180 = vpop.f32.mrb[0].mxu0
        %v1181 = vadd.f32 %v1056, %v1180
        %v1182 = vpop.f32.mrb[0].mxu0
        %v1183 = vpop.f32.mrb[0].mxu0
        %v1184 = vadd.f32 %v1056, %v1183
        %v1185 = vpop.f32.mrb[0].mxu0
        %1186 = vmatprep.mubr.bf16.mxu0 0
        %1187 = vmatmul.mubr.bf16.gmra.mrb[0].mxu0 %v697
        %v1188 = vpop.f32.mrb[0].mxu0
        %v1189 = vadd.f32 %v1056, %v1188
        %v1190 = vpop.f32.mrb[0].mxu0
        %v1191 = vpop.f32.mrb[0].mxu0
        %v1192 = vadd.f32 %v1056, %v1191
        %v1193 = vpop.f32.mrb[0].mxu0
        %1194 = vmatprep.mubr.bf16.mxu0 0
        %1195 = vmatmul.mubr.bf16.gmra.mrb[0].mxu0 %v698
        %v1196 = vpop.f32.mrb[0].mxu0
        %v1197 = vadd.f32 %v1056, %v1196
        %v1198 = vpop.f32.mrb[0].mxu0
        %v1199 = vpop.f32.mrb[0].mxu0
        %v1200 = vadd.f32 %v1056, %v1199
        %v1201 = vpop.f32.mrb[0].mxu0
        %1202 = vdwg.mxu0
        %v1203 = vmul.f32 %v805, 0.17677669
        %v1204 = vmul.f32 %v808, 0.17677669
        %v1205 = vmul.f32 %v813, 0.17677669
        %v1206 = vmul.f32 %v816, 0.17677669
        %v1207 = vmul.f32 %v821, 0.17677669
        %v1208 = vmul.f32 %v824, 0.17677669
        %v1209 = vmul.f32 %v829, 0.17677669
        %v1210 = vmul.f32 %v832, 0.17677669
        %v1211 = vmul.f32 %v837, 0.17677669
        %v1212 = vmul.f32 %v840, 0.17677669
        %v1213 = vmul.f32 %v845, 0.17677669
        %v1214 = vmul.f32 %v848, 0.17677669
        %v1215 = vmul.f32 %v853, 0.17677669
        %v1216 = vmul.f32 %v856, 0.17677669
        %v1217 = vmul.f32 %v861, 0.17677669
        %v1218 = vmul.f32 %v864, 0.17677669
        %v1219 = vpack.c.bf16 %v1204, %v1203
        %v1220 = vpack.c.bf16 %v1206, %v1205
        %v1221 = vpack.c.bf16 %v1208, %v1207
        %v1222 = vpack.c.bf16 %v1210, %v1209
        %v1223 = vpack.c.bf16 %v1212, %v1211
        %v1224 = vpack.c.bf16 %v1214, %v1213
        %v1225 = vpack.c.bf16 %v1216, %v1215
        %v1226 = vpack.c.bf16 %v1218, %v1217
        %v1227 = vpack.c.bf16 %v976, %v973
        %v1228 = vpack.c.bf16 %v984, %v981
        %v1229 = vpack.c.bf16 %v992, %v989
        %v1230 = vpack.c.bf16 %v1000, %v997
        %v1231 = vpack.c.bf16 %v1008, %v1005
        %v1232 = vpack.c.bf16 %v1016, %v1013
        %v1233 = vpack.c.bf16 %v1024, %v1021
        %v1234 = vpack.c.bf16 %v1032, %v1029
        %v1235 = vpack.c.bf16 %v1144, %v1141
        %v1236 = vpack.c.bf16 %v1152, %v1149
        %v1237 = vpack.c.bf16 %v1160, %v1157
        %v1238 = vpack.c.bf16 %v1168, %v1165
        %v1239 = vpack.c.bf16 %v1176, %v1173
        %v1240 = vpack.c.bf16 %v1184, %v1181
        %v1241 = vpack.c.bf16 %v1192, %v1189
        %v1242 = vpack.c.bf16 %v1200, %v1197
        %v1243 = vld [vmem:[%s497] sm:$0xff]
        %v1244 = vld [vmem:[%s497 + $0x8] sm:$0xff]
        %v1245 = vld [vmem:[%s497 + $0x10] sm:$0xff]
        %v1246 = vld [vmem:[%s497 + $0x18] sm:$0xff]
        %v1247 = vld [vmem:[%s497 + $0x20] sm:$0xff]
        %v1248 = vld [vmem:[%s497 + $0x28] sm:$0xff]
        %v1249 = vld [vmem:[%s497 + $0x30] sm:$0xff]
        %v1250 = vld [vmem:[%s497 + $0x38] sm:$0xff]
        %v1251 = vld [vmem:[%s497 + $0x40] sm:$0xff]
        %v1252 = vld [vmem:[%s497 + $0x48] sm:$0xff]
        %v1253 = vld [vmem:[%s497 + $0x50] sm:$0xff]
        %v1254 = vld [vmem:[%s497 + $0x58] sm:$0xff]
        %v1255 = vld [vmem:[%s497 + $0x60] sm:$0xff]
        %v1256 = vld [vmem:[%s497 + $0x68] sm:$0xff]
        %v1257 = vld [vmem:[%s497 + $0x70] sm:$0xff]
        %v1258 = vld [vmem:[%s497 + $0x78] sm:$0xff]
        %v1259 = vmul.f32 %v1243, -1e+09
        %v1260 = vmul.f32 %v1244, -1e+09
        %v1261 = vmul.f32 %v1245, -1e+09
        %v1262 = vmul.f32 %v1246, -1e+09
        %v1263 = vmul.f32 %v1247, -1e+09
        %v1264 = vmul.f32 %v1248, -1e+09
        %v1265 = vmul.f32 %v1249, -1e+09
        %v1266 = vmul.f32 %v1250, -1e+09
        %v1267 = vmul.f32 %v1251, -1e+09
        %v1268 = vmul.f32 %v1252, -1e+09
        %v1269 = vmul.f32 %v1253, -1e+09
        %v1270 = vmul.f32 %v1254, -1e+09
        %v1271 = vmul.f32 %v1255, -1e+09
        %v1272 = vmul.f32 %v1256, -1e+09
        %v1273 = vmul.f32 %v1257, -1e+09
        %v1274 = vmul.f32 %v1258, -1e+09
        %vm1275 = vcmask 261120
        %v1277 = vsel %vm1275, %v1219, 0
        %v1280 = vsel %vm1275, %v1220, 0
        %v1283 = vsel %vm1275, %v1221, 0
        %v1286 = vsel %vm1275, %v1222, 0
        %v1289 = vsel %vm1275, %v1223, 0
        %v1292 = vsel %vm1275, %v1224, 0
        %v1295 = vsel %vm1275, %v1225, 0
        %v1298 = vsel %vm1275, %v1226, 0
        %v1301 = vsel %vm1275, %v1227, 0
        %v1304 = vsel %vm1275, %v1228, 0
        %v1307 = vsel %vm1275, %v1229, 0
        %v1310 = vsel %vm1275, %v1230, 0
        %v1313 = vsel %vm1275, %v1231, 0
        %v1316 = vsel %vm1275, %v1232, 0
        %v1319 = vsel %vm1275, %v1233, 0
        %v1322 = vsel %vm1275, %v1234, 0
        %1324 = vmatprep.subr.bf16.mxu0 0
        %1325 = vmatpush1.bf16.xpose.msra.mxu0 %v1301
        %1326 = vmatprep.subr.bf16.mxu0 0
        %1327 = vmatpush1.bf16.xpose.msra.mxu0 %v1304
        %1328 = vmatprep.subr.bf16.mxu0 0
        %1329 = vmatpush1.bf16.xpose.msra.mxu0 %v1307
        %1330 = vmatprep.subr.bf16.mxu0 0
        %1331 = vmatpush1.bf16.xpose.msra.mxu0 %v1310
        %1332 = vmatprep.subr.bf16.mxu0 0
        %1333 = vmatpush1.bf16.xpose.msra.mxu0 %v1313
        %1334 = vmatprep.subr.bf16.mxu0 0
        %1335 = vmatpush1.bf16.xpose.msra.mxu0 %v1316
        %1336 = vmatprep.subr.bf16.mxu0 0
        %1337 = vmatpush1.bf16.xpose.msra.mxu0 %v1319
        %1338 = vmatprep.subr.bf16.mxu0 0
        %1339 = vmatpush1.bf16.xpose.msra.mxu0 %v1322
        %1340 = vmatprep.subr.bf16.mxu0 0
        %1341 = vmatpush1.bf16.xpose.msra.mxu0 0
        %1342 = vmatprep.subr.bf16.mxu0 0
        %1343 = vmatpush1.bf16.xpose.msra.mxu0 0
        %1344 = vmatprep.subr.bf16.mxu0 0
        %1345 = vmatpush1.bf16.xpose.msra.mxu0 0
        %1346 = vmatprep.subr.bf16.mxu0 0
        %1347 = vmatpush1.bf16.xpose.msra.mxu0 0
        %1348 = vmatprep.subr.bf16.mxu0 0
        %1349 = vmatpush1.bf16.xpose.msra.mxu0 0
        %1350 = vmatprep.subr.bf16.mxu0 0
        %1351 = vmatpush1.bf16.xpose.msra.mxu0 0
        %1352 = vmatprep.subr.bf16.mxu0 0
        %1353 = vmatpush1.bf16.xpose.msra.mxu0 0
        %1354 = vmatprep.subr.bf16.mxu0 0
        %1355 = vmatpush1.bf16.xpose.msra.mxu0 0
        %1356 = vmatprep.mubr.bf16.mxu0 0
        %1357 = vmatmul.mubr.bf16.gmra.mrb[0].mxu0 %v1277
        %v1358 = vpop.f32.mrb[0].mxu0
        %v1359 = vadd.f32 %v1259, %v1358
        %v1360 = vpop.f32.mrb[0].mxu0
        %v1361 = vpop.f32.mrb[0].mxu0
        %v1362 = vadd.f32 %v1260, %v1361
        %v1363 = vpop.f32.mrb[0].mxu0
        %1364 = vmatprep.mubr.bf16.mxu0 0
        %1365 = vmatmul.mubr.bf16.gmra.mrb[0].mxu0 %v1280
        %v1366 = vpop.f32.mrb[0].mxu0
        %v1367 = vadd.f32 %v1261, %v1366
        %v1368 = vpop.f32.mrb[0].mxu0
        %v1369 = vpop.f32.mrb[0].mxu0
        %v1370 = vadd.f32 %v1262, %v1369
        %v1371 = vpop.f32.mrb[0].mxu0
        %1372 = vmatprep.mubr.bf16.mxu0 0
        %1373 = vmatmul.mubr.bf16.gmra.mrb[0].mxu0 %v1283
        %v1374 = vpop.f32.mrb[0].mxu0
        %v1375 = vadd.f32 %v1263, %v1374
        %v1376 = vpop.f32.mrb[0].mxu0
        %v1377 = vpop.f32.mrb[0].mxu0
        %v1378 = vadd.f32 %v1264, %v1377
        %v1379 = vpop.f32.mrb[0].mxu0
        %1380 = vmatprep.mubr.bf16.mxu0 0
        %1381 = vmatmul.mubr.bf16.gmra.mrb[0].mxu0 %v1286
        %v1382 = vpop.f32.mrb[0].mxu0
        %v1383 = vadd.f32 %v1265, %v1382
        %v1384 = vpop.f32.mrb[0].mxu0
        %v1385 = vpop.f32.mrb[0].mxu0
        %v1386 = vadd.f32 %v1266, %v1385
        %v1387 = vpop.f32.mrb[0].mxu0
        %1388 = vmatprep.mubr.bf16.mxu0 0
        %1389 = vmatmul.mubr.bf16.gmra.mrb[0].mxu0 %v1289
        %v1390 = vpop.f32.mrb[0].mxu0
        %v1391 = vadd.f32 %v1267, %v1390
        %v1392 = vpop.f32.mrb[0].mxu0
        %v1393 = vpop.f32.mrb[0].mxu0
        %v1394 = vadd.f32 %v1268, %v1393
        %v1395 = vpop.f32.mrb[0].mxu0
        %1396 = vmatprep.mubr.bf16.mxu0 0
        %1397 = vmatmul.mubr.bf16.gmra.mrb[0].mxu0 %v1292
        %v1398 = vpop.f32.mrb[0].mxu0
        %v1399 = vadd.f32 %v1269, %v1398
        %v1400 = vpop.f32.mrb[0].mxu0
        %v1401 = vpop.f32.mrb[0].mxu0
        %v1402 = vadd.f32 %v1270, %v1401
        %v1403 = vpop.f32.mrb[0].mxu0
        %1404 = vmatprep.mubr.bf16.mxu0 0
        %1405 = vmatmul.mubr.bf16.gmra.mrb[0].mxu0 %v1295
        %v1406 = vpop.f32.mrb[0].mxu0
        %v1407 = vadd.f32 %v1271, %v1406
        %v1408 = vpop.f32.mrb[0].mxu0
        %v1409 = vpop.f32.mrb[0].mxu0
        %v1410 = vadd.f32 %v1272, %v1409
        %v1411 = vpop.f32.mrb[0].mxu0
        %1412 = vmatprep.mubr.bf16.mxu0 0
        %1413 = vmatmul.mubr.bf16.gmra.mrb[0].mxu0 %v1298
        %v1414 = vpop.f32.mrb[0].mxu0
        %v1415 = vadd.f32 %v1273, %v1414
        %v1416 = vpop.f32.mrb[0].mxu0
        %v1417 = vpop.f32.mrb[0].mxu0
        %v1418 = vadd.f32 %v1274, %v1417
        %v1419 = vpop.f32.mrb[0].mxu0
        %1420 = vdwg.mxu0
        %1421 = vmax.xlane.f32.xlu0 %v1359
        %v1422 = vpop.xlane.xlu0 %1421
        %1423 = vmax.xlane.f32.xlu0 %v1362
        %v1424 = vpop.xlane.xlu0 %1423
        %1425 = vmax.xlane.f32.xlu0 %v1367
        %v1426 = vpop.xlane.xlu0 %1425
        %1427 = vmax.xlane.f32.xlu0 %v1370
        %v1428 = vpop.xlane.xlu0 %1427
        %1429 = vmax.xlane.f32.xlu0 %v1375
        %v1430 = vpop.xlane.xlu0 %1429
        %1431 = vmax.xlane.f32.xlu0 %v1378
        %v1432 = vpop.xlane.xlu0 %1431
        %1433 = vmax.xlane.f32.xlu0 %v1383
        %v1434 = vpop.xlane.xlu0 %1433
        %1435 = vmax.xlane.f32.xlu0 %v1386
        %v1436 = vpop.xlane.xlu0 %1435
        %1437 = vmax.xlane.f32.xlu0 %v1391
        %v1438 = vpop.xlane.xlu0 %1437
        %1439 = vmax.xlane.f32.xlu0 %v1394
        %v1440 = vpop.xlane.xlu0 %1439
        %1441 = vmax.xlane.f32.xlu0 %v1399
        %v1442 = vpop.xlane.xlu0 %1441
        %1443 = vmax.xlane.f32.xlu0 %v1402
        %v1444 = vpop.xlane.xlu0 %1443
        %1445 = vmax.xlane.f32.xlu0 %v1407
        %v1446 = vpop.xlane.xlu0 %1445
        %1447 = vmax.xlane.f32.xlu0 %v1410
        %v1448 = vpop.xlane.xlu0 %1447
        %1449 = vmax.xlane.f32.xlu0 %v1415
        %v1450 = vpop.xlane.xlu0 %1449
        %1451 = vmax.xlane.f32.xlu0 %v1418
        %v1452 = vpop.xlane.xlu0 %1451
        %v1453 = vsub.f32 %v1359, %v1422
        %v1454 = vsub.f32 %v1362, %v1424
        %v1455 = vsub.f32 %v1367, %v1426
        %v1456 = vsub.f32 %v1370, %v1428
        %v1457 = vsub.f32 %v1375, %v1430
        %v1458 = vsub.f32 %v1378, %v1432
        %v1459 = vsub.f32 %v1383, %v1434
        %v1460 = vsub.f32 %v1386, %v1436
        %v1461 = vsub.f32 %v1391, %v1438
        %v1462 = vsub.f32 %v1394, %v1440
        %v1463 = vsub.f32 %v1399, %v1442
        %v1464 = vsub.f32 %v1402, %v1444
        %v1465 = vsub.f32 %v1407, %v1446
        %v1466 = vsub.f32 %v1410, %v1448
        %v1467 = vsub.f32 %v1415, %v1450
        %v1468 = vsub.f32 %v1418, %v1452
        %v1469 = vmul.f32 %v1453, 1.442695
        %v1470 = vpow.pop %v1469
        %v1471 = vmul.f32 %v1454, 1.442695
        %v1472 = vpow.pop %v1471
        %v1473 = vmul.f32 %v1455, 1.442695
        %v1474 = vpow.pop %v1473
        %v1475 = vmul.f32 %v1456, 1.442695
        %v1476 = vpow.pop %v1475
        %v1477 = vmul.f32 %v1457, 1.442695
        %v1478 = vpow.pop %v1477
        %v1479 = vmul.f32 %v1458, 1.442695
        %v1480 = vpow.pop %v1479
        %v1481 = vmul.f32 %v1459, 1.442695
        %v1482 = vpow.pop %v1481
        %v1483 = vmul.f32 %v1460, 1.442695
        %v1484 = vpow.pop %v1483
        %v1485 = vmul.f32 %v1461, 1.442695
        %v1486 = vpow.pop %v1485
        %v1487 = vmul.f32 %v1462, 1.442695
        %v1488 = vpow.pop %v1487
        %v1489 = vmul.f32 %v1463, 1.442695
        %v1490 = vpow.pop %v1489
        %v1491 = vmul.f32 %v1464, 1.442695
        %v1492 = vpow.pop %v1491
        %v1493 = vmul.f32 %v1465, 1.442695
        %v1494 = vpow.pop %v1493
        %v1495 = vmul.f32 %v1466, 1.442695
        %v1496 = vpow.pop %v1495
        %v1497 = vmul.f32 %v1467, 1.442695
        %v1498 = vpow.pop %v1497
        %v1499 = vmul.f32 %v1468, 1.442695
        %v1500 = vpow.pop %v1499
        %1501 = vadd.xlane.f32.xlu0 %v1470
        %v1502 = vpop.xlane.xlu0 %1501
        %1503 = vadd.xlane.f32.xlu0 %v1472
        %v1504 = vpop.xlane.xlu0 %1503
        %1505 = vadd.xlane.f32.xlu0 %v1474
        %v1506 = vpop.xlane.xlu0 %1505
        %1507 = vadd.xlane.f32.xlu0 %v1476
        %v1508 = vpop.xlane.xlu0 %1507
        %1509 = vadd.xlane.f32.xlu0 %v1478
        %v1510 = vpop.xlane.xlu0 %1509
        %1511 = vadd.xlane.f32.xlu0 %v1480
        %v1512 = vpop.xlane.xlu0 %1511
        %1513 = vadd.xlane.f32.xlu0 %v1482
        %v1514 = vpop.xlane.xlu0 %1513
        %1515 = vadd.xlane.f32.xlu0 %v1484
        %v1516 = vpop.xlane.xlu0 %1515
        %1517 = vadd.xlane.f32.xlu0 %v1486
        %v1518 = vpop.xlane.xlu0 %1517
        %1519 = vadd.xlane.f32.xlu0 %v1488
        %v1520 = vpop.xlane.xlu0 %1519
        %1521 = vadd.xlane.f32.xlu0 %v1490
        %v1522 = vpop.xlane.xlu0 %1521
        %1523 = vadd.xlane.f32.xlu0 %v1492
        %v1524 = vpop.xlane.xlu0 %1523
        %1525 = vadd.xlane.f32.xlu0 %v1494
        %v1526 = vpop.xlane.xlu0 %1525
        %1527 = vadd.xlane.f32.xlu0 %v1496
        %v1528 = vpop.xlane.xlu0 %1527
        %1529 = vadd.xlane.f32.xlu0 %v1498
        %v1530 = vpop.xlane.xlu0 %1529
        %1531 = vadd.xlane.f32.xlu0 %v1500
        %v1532 = vpop.xlane.xlu0 %1531
        %v1533 = vrcp.pop %v1502
        %v1534 = vrcp.pop %v1504
        %v1535 = vrcp.pop %v1506
        %v1536 = vrcp.pop %v1508
        %v1537 = vrcp.pop %v1510
        %v1538 = vrcp.pop %v1512
        %v1539 = vrcp.pop %v1514
        %v1540 = vrcp.pop %v1516
        %v1541 = vrcp.pop %v1518
        %v1542 = vrcp.pop %v1520
        %v1543 = vrcp.pop %v1522
        %v1544 = vrcp.pop %v1524
        %v1545 = vrcp.pop %v1526
        %v1546 = vrcp.pop %v1528
        %v1547 = vrcp.pop %v1530
        %v1548 = vrcp.pop %v1532
        %v1549 = vmul.f32 %v1470, %v1533
        %v1550 = vmul.f32 %v1472, %v1534
        %v1551 = vmul.f32 %v1474, %v1535
        %v1552 = vmul.f32 %v1476, %v1536
        %v1553 = vmul.f32 %v1478, %v1537
        %v1554 = vmul.f32 %v1480, %v1538
        %v1555 = vmul.f32 %v1482, %v1539
        %v1556 = vmul.f32 %v1484, %v1540
        %v1557 = vmul.f32 %v1486, %v1541
        %v1558 = vmul.f32 %v1488, %v1542
        %v1559 = vmul.f32 %v1490, %v1543
        %v1560 = vmul.f32 %v1492, %v1544
        %v1561 = vmul.f32 %v1494, %v1545
        %v1562 = vmul.f32 %v1496, %v1546
        %v1563 = vmul.f32 %v1498, %v1547
        %v1564 = vmul.f32 %v1500, %v1548
        %v1565 = vpack.c.bf16 %v1550, %v1549
        %v1566 = vpack.c.bf16 %v1552, %v1551
        %v1567 = vpack.c.bf16 %v1554, %v1553
        %v1568 = vpack.c.bf16 %v1556, %v1555
        %v1569 = vpack.c.bf16 %v1558, %v1557
        %v1570 = vpack.c.bf16 %v1560, %v1559
        %v1571 = vpack.c.bf16 %v1562, %v1561
        %v1572 = vpack.c.bf16 %v1564, %v1563
        %1573 = vmatprep.subr.bf16.mxu0 0
        %1574 = vmatpush1.bf16.msra.mxu0 %v1235
        %1575 = vmatprep.subr.bf16.mxu0 0
        %1576 = vmatpush1.bf16.msra.mxu0 %v1236
        %1577 = vmatprep.subr.bf16.mxu0 0
        %1578 = vmatpush1.bf16.msra.mxu0 %v1237
        %1579 = vmatprep.subr.bf16.mxu0 0
        %1580 = vmatpush1.bf16.msra.mxu0 %v1238
        %1581 = vmatprep.subr.bf16.mxu0 0
        %1582 = vmatpush1.bf16.msra.mxu0 %v1239
        %1583 = vmatprep.subr.bf16.mxu0 0
        %1584 = vmatpush1.bf16.msra.mxu0 %v1240
        %1585 = vmatprep.subr.bf16.mxu0 0
        %1586 = vmatpush1.bf16.msra.mxu0 %v1241
        %1587 = vmatprep.subr.bf16.mxu0 0
        %1588 = vmatpush1.bf16.msra.mxu0 %v1242
        %1589 = vmatprep.subr.bf16.mxu0 0
        %1590 = vmatpush1.bf16.msra.mxu0 0
        %1591 = vmatprep.subr.bf16.mxu0 0
        %1592 = vmatpush1.bf16.msra.mxu0 0
        %1593 = vmatprep.subr.bf16.mxu0 0
        %1594 = vmatpush1.bf16.msra.mxu0 0
        %1595 = vmatprep.subr.bf16.mxu0 0
        %1596 = vmatpush1.bf16.msra.mxu0 0
        %1597 = vmatprep.subr.bf16.mxu0 0
        %1598 = vmatpush1.bf16.msra.mxu0 0
        %1599 = vmatprep.subr.bf16.mxu0 0
        %1600 = vmatpush1.bf16.msra.mxu0 0
        %1601 = vmatprep.subr.bf16.mxu0 0
        %1602 = vmatpush1.bf16.msra.mxu0 0
        %1603 = vmatprep.subr.bf16.mxu0 0
        %1604 = vmatpush1.bf16.msra.mxu0 0
        %1605 = vmatprep.mubr.bf16.mxu0 0
        %1606 = vmatmul.mubr.bf16.gmra.mrb[0].mxu0 %v1565
        %v1607 = vpop.f32.mrb[0].mxu0
        %v1608 = vadd.f32 0.0, %v1607
        %v1609 = vpop.f32.mrb[0].mxu0
        %v1610 = vpop.f32.mrb[0].mxu0
        %v1611 = vadd.f32 0.0, %v1610
        %v1612 = vpop.f32.mrb[0].mxu0
        %1613 = vmatprep.mubr.bf16.mxu0 0
        %1614 = vmatmul.mubr.bf16.gmra.mrb[0].mxu0 %v1566
        %v1615 = vpop.f32.mrb[0].mxu0
        %v1616 = vadd.f32 0.0, %v1615
        %v1617 = vpop.f32.mrb[0].mxu0
        %v1618 = vpop.f32.mrb[0].mxu0
        %v1619 = vadd.f32 0.0, %v1618
        %v1620 = vpop.f32.mrb[0].mxu0
        %1621 = vmatprep.mubr.bf16.mxu0 0
        %1622 = vmatmul.mubr.bf16.gmra.mrb[0].mxu0 %v1567
        %v1623 = vpop.f32.mrb[0].mxu0
        %v1624 = vadd.f32 0.0, %v1623
        %v1625 = vpop.f32.mrb[0].mxu0
        %v1626 = vpop.f32.mrb[0].mxu0
        %v1627 = vadd.f32 0.0, %v1626
        %v1628 = vpop.f32.mrb[0].mxu0
        %1629 = vmatprep.mubr.bf16.mxu0 0
        %1630 = vmatmul.mubr.bf16.gmra.mrb[0].mxu0 %v1568
        %v1631 = vpop.f32.mrb[0].mxu0
        %v1632 = vadd.f32 0.0, %v1631
        %v1633 = vpop.f32.mrb[0].mxu0
        %v1634 = vpop.f32.mrb[0].mxu0
        %v1635 = vadd.f32 0.0, %v1634
        %v1636 = vpop.f32.mrb[0].mxu0
        %1637 = vmatprep.mubr.bf16.mxu0 0
        %1638 = vmatmul.mubr.bf16.gmra.mrb[0].mxu0 %v1569
        %v1639 = vpop.f32.mrb[0].mxu0
        %v1640 = vadd.f32 0.0, %v1639
        %v1641 = vpop.f32.mrb[0].mxu0
        %v1642 = vpop.f32.mrb[0].mxu0
        %v1643 = vadd.f32 0.0, %v1642
        %v1644 = vpop.f32.mrb[0].mxu0
        %1645 = vmatprep.mubr.bf16.mxu0 0
        %1646 = vmatmul.mubr.bf16.gmra.mrb[0].mxu0 %v1570
        %v1647 = vpop.f32.mrb[0].mxu0
        %v1648 = vadd.f32 0.0, %v1647
        %v1649 = vpop.f32.mrb[0].mxu0
        %v1650 = vpop.f32.mrb[0].mxu0
        %v1651 = vadd.f32 0.0, %v1650
        %v1652 = vpop.f32.mrb[0].mxu0
        %1653 = vmatprep.mubr.bf16.mxu0 0
        %1654 = vmatmul.mubr.bf16.gmra.mrb[0].mxu0 %v1571
        %v1655 = vpop.f32.mrb[0].mxu0
        %v1656 = vadd.f32 0.0, %v1655
        %v1657 = vpop.f32.mrb[0].mxu0
        %v1658 = vpop.f32.mrb[0].mxu0
        %v1659 = vadd.f32 0.0, %v1658
        %v1660 = vpop.f32.mrb[0].mxu0
        %1661 = vmatprep.mubr.bf16.mxu0 0
        %1662 = vmatmul.mubr.bf16.gmra.mrb[0].mxu0 %v1572
        %v1663 = vpop.f32.mrb[0].mxu0
        %v1664 = vadd.f32 0.0, %v1663
        %v1665 = vpop.f32.mrb[0].mxu0
        %v1666 = vpop.f32.mrb[0].mxu0
        %v1667 = vadd.f32 0.0, %v1666
        %v1668 = vpop.f32.mrb[0].mxu0
        %1669 = vdwg.mxu0
        %v1670 = vpack.c.bf16 %v1611, %v1608
        %v1671 = vpack.c.bf16 %v1619, %v1616
        %v1672 = vpack.c.bf16 %v1627, %v1624
        %v1673 = vpack.c.bf16 %v1635, %v1632
        %v1674 = vpack.c.bf16 %v1643, %v1640
        %v1675 = vpack.c.bf16 %v1651, %v1648
        %v1676 = vpack.c.bf16 %v1659, %v1656
        %v1677 = vpack.c.bf16 %v1667, %v1664
        %v1678 = vld [vmem:[%s625] sm:$0xf]
        %v1679 = vld [vmem:[%s625 + $0x4] sm:$0xf]
        %v1680 = vld [vmem:[%s625 + $0x8] sm:$0xf]
        %v1681 = vld [vmem:[%s625 + $0xc] sm:$0xf]
        %v1686 = vunpack.c.l.b16 %v1678
        %v1687 = vunpack.c.l.b16 %v1679
        %v1688 = vunpack.c.l.b16 %v1680
        %v1689 = vunpack.c.l.b16 %v1681
        %v1690 = vpack.c.b16 %v1687, %v1686
        %v1691 = vpack.c.b16 %v1689, %v1688
        %v1695 = vsel %vm1275, %v1670, 0
        %v1698 = vsel %vm1275, %v1671, 0
        %v1701 = vsel %vm1275, %v1672, 0
        %v1704 = vsel %vm1275, %v1673, 0
        %v1707 = vsel %vm1275, %v1674, 0
        %v1710 = vsel %vm1275, %v1675, 0
        %v1713 = vsel %vm1275, %v1676, 0
        %v1716 = vsel %vm1275, %v1677, 0
        %1718 = vmatprep.subr.bf16.mxu0 0
        %1719 = vmatpush1.bf16.msra.mxu0 %v1690
        %1720 = vmatprep.subr.bf16.mxu0 0
        %1721 = vmatpush1.bf16.msra.mxu0 %v1691
        %1722 = vmatprep.subr.bf16.mxu0 0
        %1723 = vmatpush1.bf16.msra.mxu0 0
        %1724 = vmatprep.subr.bf16.mxu0 0
        %1725 = vmatpush1.bf16.msra.mxu0 0
        %1726 = vmatprep.subr.bf16.mxu0 0
        %1727 = vmatpush1.bf16.msra.mxu0 0
        %1728 = vmatprep.subr.bf16.mxu0 0
        %1729 = vmatpush1.bf16.msra.mxu0 0
        %1730 = vmatprep.subr.bf16.mxu0 0
        %1731 = vmatpush1.bf16.msra.mxu0 0
        %1732 = vmatprep.subr.bf16.mxu0 0
        %1733 = vmatpush1.bf16.msra.mxu0 0
        %1734 = vmatprep.subr.bf16.mxu0 0
        %1735 = vmatpush1.bf16.msra.mxu0 0
        %1736 = vmatprep.subr.bf16.mxu0 0
        %1737 = vmatpush1.bf16.msra.mxu0 0
        %1738 = vmatprep.subr.bf16.mxu0 0
        %1739 = vmatpush1.bf16.msra.mxu0 0
        %1740 = vmatprep.subr.bf16.mxu0 0
        %1741 = vmatpush1.bf16.msra.mxu0 0
        %1742 = vmatprep.subr.bf16.mxu0 0
        %1743 = vmatpush1.bf16.msra.mxu0 0
        %1744 = vmatprep.subr.bf16.mxu0 0
        %1745 = vmatpush1.bf16.msra.mxu0 0
        %1746 = vmatprep.subr.bf16.mxu0 0
        %1747 = vmatpush1.bf16.msra.mxu0 0
        %1748 = vmatprep.subr.bf16.mxu0 0
        %1749 = vmatpush1.bf16.msra.mxu0 0
        %1750 = vmatprep.mubr.bf16.mxu0 0
        %1751 = vmatmul.mubr.bf16.gmra.mrb[0].mxu0 %v1695
        %v1752 = vpop.f32.mrb[0].mxu0
        %v1753 = vadd.f32 0.0, %v1752
        %v1754 = vpop.f32.mrb[0].mxu0
        %v1755 = vpop.f32.mrb[0].mxu0
        %v1756 = vadd.f32 0.0, %v1755
        %v1757 = vpop.f32.mrb[0].mxu0
        %1758 = vmatprep.mubr.bf16.mxu0 0
        %1759 = vmatmul.mubr.bf16.gmra.mrb[0].mxu0 %v1698
        %v1760 = vpop.f32.mrb[0].mxu0
        %v1761 = vadd.f32 0.0, %v1760
        %v1762 = vpop.f32.mrb[0].mxu0
        %v1763 = vpop.f32.mrb[0].mxu0
        %v1764 = vadd.f32 0.0, %v1763
        %v1765 = vpop.f32.mrb[0].mxu0
        %1766 = vmatprep.mubr.bf16.mxu0 0
        %1767 = vmatmul.mubr.bf16.gmra.mrb[0].mxu0 %v1701
        %v1768 = vpop.f32.mrb[0].mxu0
        %v1769 = vadd.f32 0.0, %v1768
        %v1770 = vpop.f32.mrb[0].mxu0
        %v1771 = vpop.f32.mrb[0].mxu0
        %v1772 = vadd.f32 0.0, %v1771
        %v1773 = vpop.f32.mrb[0].mxu0
        %1774 = vmatprep.mubr.bf16.mxu0 0
        %1775 = vmatmul.mubr.bf16.gmra.mrb[0].mxu0 %v1704
        %v1776 = vpop.f32.mrb[0].mxu0
        %v1777 = vadd.f32 0.0, %v1776
        %v1778 = vpop.f32.mrb[0].mxu0
        %v1779 = vpop.f32.mrb[0].mxu0
        %v1780 = vadd.f32 0.0, %v1779
        %v1781 = vpop.f32.mrb[0].mxu0
        %1782 = vmatprep.mubr.bf16.mxu0 0
        %1783 = vmatmul.mubr.bf16.gmra.mrb[0].mxu0 %v1707
        %v1784 = vpop.f32.mrb[0].mxu0
        %v1785 = vadd.f32 0.0, %v1784
        %v1786 = vpop.f32.mrb[0].mxu0
        %v1787 = vpop.f32.mrb[0].mxu0
        %v1788 = vadd.f32 0.0, %v1787
        %v1789 = vpop.f32.mrb[0].mxu0
        %1790 = vmatprep.mubr.bf16.mxu0 0
        %1791 = vmatmul.mubr.bf16.gmra.mrb[0].mxu0 %v1710
        %v1792 = vpop.f32.mrb[0].mxu0
        %v1793 = vadd.f32 0.0, %v1792
        %v1794 = vpop.f32.mrb[0].mxu0
        %v1795 = vpop.f32.mrb[0].mxu0
        %v1796 = vadd.f32 0.0, %v1795
        %v1797 = vpop.f32.mrb[0].mxu0
        %1798 = vmatprep.mubr.bf16.mxu0 0
        %1799 = vmatmul.mubr.bf16.gmra.mrb[0].mxu0 %v1713
        %v1800 = vpop.f32.mrb[0].mxu0
        %v1801 = vadd.f32 0.0, %v1800
        %v1802 = vpop.f32.mrb[0].mxu0
        %v1803 = vpop.f32.mrb[0].mxu0
        %v1804 = vadd.f32 0.0, %v1803
        %v1805 = vpop.f32.mrb[0].mxu0
        %1806 = vmatprep.mubr.bf16.mxu0 0
        %1807 = vmatmul.mubr.bf16.gmra.mrb[0].mxu0 %v1716
        %v1808 = vpop.f32.mrb[0].mxu0
        %v1809 = vadd.f32 0.0, %v1808
        %v1810 = vpop.f32.mrb[0].mxu0
        %v1811 = vpop.f32.mrb[0].mxu0
        %v1812 = vadd.f32 0.0, %v1811
        %v1813 = vpop.f32.mrb[0].mxu0
        %1814 = vdwg.mxu0
        %p1815 = scmp.eq.s32.totalorder %s34, 0
        // Predicated region
        $region73: #{tpu_custom_call.1} parent=67 // pred_check
          %p1816 = pneg %p1815
        $region74: #{tpu_custom_call.1} parent=67 // pred_check_branch
          %1818 = sbr.rel (%p1816) target = $region76
        $region75: #{tpu_custom_call.1} parent=67 // pred_region
          %v1819 = vld [vmem:[%s11] sm:$0x1]
          %v1821 = vlaneseq
          %v1822 = vshrl.u32 %v1821, 7
          %v1823 = vsub.s32 0, %v1822
          %v1824 = vrot.slane %v1819, %v1823
          %v1826 = vadd.f32 %v1753, %v1824
          %v1827 = vadd.f32 %v1756, %v1824
          %v1828 = vadd.f32 %v1761, %v1824
          %v1829 = vadd.f32 %v1764, %v1824
          %v1830 = vadd.f32 %v1769, %v1824
          %v1831 = vadd.f32 %v1772, %v1824
          %v1832 = vadd.f32 %v1777, %v1824
          %v1833 = vadd.f32 %v1780, %v1824
          %v1834 = vadd.f32 %v1785, %v1824
          %v1835 = vadd.f32 %v1788, %v1824
          %v1836 = vadd.f32 %v1793, %v1824
          %v1837 = vadd.f32 %v1796, %v1824
          %v1838 = vadd.f32 %v1801, %v1824
          %v1839 = vadd.f32 %v1804, %v1824
          %v1840 = vadd.f32 %v1809, %v1824
          %v1841 = vadd.f32 %v1812, %v1824
          %1842 = vst [vmem:[%s581] sm:$0xff] %v1826
          %1843 = vst [vmem:[%s581 + $0x8] sm:$0xff] %v1827
          %1844 = vst [vmem:[%s581 + $0x10] sm:$0xff] %v1828
          %1845 = vst [vmem:[%s581 + $0x18] sm:$0xff] %v1829
          %1846 = vst [vmem:[%s581 + $0x20] sm:$0xff] %v1830
          %1847 = vst [vmem:[%s581 + $0x28] sm:$0xff] %v1831
          %1848 = vst [vmem:[%s581 + $0x30] sm:$0xff] %v1832
          %1849 = vst [vmem:[%s581 + $0x38] sm:$0xff] %v1833
          %1850 = vst [vmem:[%s581 + $0x40] sm:$0xff] %v1834
          %1851 = vst [vmem:[%s581 + $0x48] sm:$0xff] %v1835
          %1852 = vst [vmem:[%s581 + $0x50] sm:$0xff] %v1836
          %1853 = vst [vmem:[%s581 + $0x58] sm:$0xff] %v1837
          %1854 = vst [vmem:[%s581 + $0x60] sm:$0xff] %v1838
          %1855 = vst [vmem:[%s581 + $0x68] sm:$0xff] %v1839
          %1856 = vst [vmem:[%s581 + $0x70] sm:$0xff] %v1840
          %1857 = vst [vmem:[%s581 + $0x78] sm:$0xff] %v1841
        $region76: #{tpu_custom_call.1} parent=67 // pred_fallthru
          _
        %p1858 = scmp.gt.s32.totalorder %s34, 0
        // Predicated region
        $region77: #{tpu_custom_call.1} parent=67 // pred_check
          %p1859 = pneg %p1858
        $region78: #{tpu_custom_call.1} parent=67 // pred_check_branch
          %1861 = sbr.rel (%p1859) target = $region80
        $region79: #{tpu_custom_call.1} parent=67 // pred_region
          %v1862 = vld [vmem:[%s581] sm:$0xff]
          %v1863 = vld [vmem:[%s581 + $0x8] sm:$0xff]
          %v1864 = vld [vmem:[%s581 + $0x10] sm:$0xff]
          %v1865 = vld [vmem:[%s581 + $0x18] sm:$0xff]
          %v1866 = vld [vmem:[%s581 + $0x20] sm:$0xff]
          %v1867 = vld [vmem:[%s581 + $0x28] sm:$0xff]
          %v1868 = vld [vmem:[%s581 + $0x30] sm:$0xff]
          %v1869 = vld [vmem:[%s581 + $0x38] sm:$0xff]
          %v1870 = vld [vmem:[%s581 + $0x40] sm:$0xff]
          %v1871 = vld [vmem:[%s581 + $0x48] sm:$0xff]
          %v1872 = vld [vmem:[%s581 + $0x50] sm:$0xff]
          %v1873 = vld [vmem:[%s581 + $0x58] sm:$0xff]
          %v1874 = vld [vmem:[%s581 + $0x60] sm:$0xff]
          %v1875 = vld [vmem:[%s581 + $0x68] sm:$0xff]
          %v1876 = vld [vmem:[%s581 + $0x70] sm:$0xff]
          %v1877 = vld [vmem:[%s581 + $0x78] sm:$0xff]
          %v1878 = vadd.f32 %v1862, %v1753
          %v1879 = vadd.f32 %v1863, %v1756
          %v1880 = vadd.f32 %v1864, %v1761
          %v1881 = vadd.f32 %v1865, %v1764
          %v1882 = vadd.f32 %v1866, %v1769
          %v1883 = vadd.f32 %v1867, %v1772
          %v1884 = vadd.f32 %v1868, %v1777
          %v1885 = vadd.f32 %v1869, %v1780
          %v1886 = vadd.f32 %v1870, %v1785
          %v1887 = vadd.f32 %v1871, %v1788
          %v1888 = vadd.f32 %v1872, %v1793
          %v1889 = vadd.f32 %v1873, %v1796
          %v1890 = vadd.f32 %v1874, %v1801
          %v1891 = vadd.f32 %v1875, %v1804
          %v1892 = vadd.f32 %v1876, %v1809
          %v1893 = vadd.f32 %v1877, %v1812
          %1894 = vst [vmem:[%s581] sm:$0xff] %v1878
          %1895 = vst [vmem:[%s581 + $0x8] sm:$0xff] %v1879
          %1896 = vst [vmem:[%s581 + $0x10] sm:$0xff] %v1880
          %1897 = vst [vmem:[%s581 + $0x18] sm:$0xff] %v1881
          %1898 = vst [vmem:[%s581 + $0x20] sm:$0xff] %v1882
          %1899 = vst [vmem:[%s581 + $0x28] sm:$0xff] %v1883
          %1900 = vst [vmem:[%s581 + $0x30] sm:$0xff] %v1884
          %1901 = vst [vmem:[%s581 + $0x38] sm:$0xff] %v1885
          %1902 = vst [vmem:[%s581 + $0x40] sm:$0xff] %v1886
          %1903 = vst [vmem:[%s581 + $0x48] sm:$0xff] %v1887
          %1904 = vst [vmem:[%s581 + $0x50] sm:$0xff] %v1888
          %1905 = vst [vmem:[%s581 + $0x58] sm:$0xff] %v1889
          %1906 = vst [vmem:[%s581 + $0x60] sm:$0xff] %v1890
          %1907 = vst [vmem:[%s581 + $0x68] sm:$0xff] %v1891
          %1908 = vst [vmem:[%s581 + $0x70] sm:$0xff] %v1892
          %1909 = vst [vmem:[%s581 + $0x78] sm:$0xff] %v1893
        $region80: #{tpu_custom_call.1} parent=67 // pred_fallthru
          _
        %s1910 = sand.u32 %s356, 1
        %s1911 = scalar_lea.sflag [#allocation4], %s1910
        %s1912 = sand.u32 %s356, 1
        %s1913 = smul.addr %s1912, 128
        %s1914 = scalar_lea.vmem [#allocation5], %s1913
        // Predicated region
        $region81: #{tpu_custom_call.1} parent=67 // pred_check
          %p1915 = pneg %p366
        $region82: #{tpu_custom_call.1} parent=67 // pred_check_branch
          %1917 = sbr.rel (%p1915) target = $region84
        $region83: #{tpu_custom_call.1} parent=67 // pred_region
          %s1919 = ssub.s32 2048, 2048
          %1920 = vsyncadd %s1911, %s1919
          %s1921 = smul.addr %s33, 16
          %s1922 = smul.addr %s1921, 128
          %s1923 = scalar_lea.hbm %s12, %s1922
          %s1924 = sshll.u32 %s1914, 4
          %s1925 = int_to_ptr.vmem [resolvable:$true] %s1924
          %1930 = dma.vmem_to_hbm [thread:$0]  %s1925, 2048, %s1923, %s1911, 128, 128, 8
        $region84: #{tpu_custom_call.1} parent=67 // pred_fallthru
          _
      $region68: #{tpu_custom_call.1} parent=5 // pred_fallthru
        _
      %p1931 = scmp.le.s32.totalorder 2, %s24
      // Predicated region
      $region85: #{tpu_custom_call.1} parent=5 // pred_check
        %p1932 = pneg %p1931
      $region86: #{tpu_custom_call.1} parent=5 // pred_check_branch
        %1934 = sbr.rel (%p1932) target = $region88
      $region87: #{tpu_custom_call.1} parent=5 // pred_region
        %s1935 = ssub.s32 %s24, 2
        // Predicated region
        $region89: #{tpu_custom_call.1} parent=87 // pred_check
          %p1936 = pneg %p372
        $region90: #{tpu_custom_call.1} parent=87 // pred_check_branch
          %1938 = sbr.rel (%p1936) target = $region92
        $region91: #{tpu_custom_call.1} parent=87 // pred_region
          %s1939 = sand.u32 %s357, 1
          %s1940 = scalar_lea.sflag [#allocation4], %s1939
          %s1941 = sand.u32 %s357, 1
          %s1942 = smul.addr %s1941, 128
          %s1943 = scalar_lea.vmem [#allocation5], %s1942
          %1944 = dma.done %s1940, 2048
        $region92: #{tpu_custom_call.1} parent=87 // pred_fallthru
          _
      $region88: #{tpu_custom_call.1} parent=5 // pred_fallthru
        _
    $region6: #{tpu_custom_call.1} parent=1 // loop_footer
      %s28 = sadd.s32 1, %s24
    $region7: #{tpu_custom_call.1} parent=1 // loop_footer_branch
      %23 = sbr.rel target = $region3
    $region8: #{tpu_custom_call.1} parent=1 // loop_exit
      _
    %1945 = vsyncpa [#allocation3], 1
    %s1946 = scalar_lea.sflag [#allocation3], 1
    %1947 = vsyncpa %s1946, 1
    %1948 = vsyncpa [#allocation4], 1
    %s1949 = scalar_lea.sflag [#allocation4], 1
    %1950 = vsyncpa %s1949, 1

</llo_original>
